<compile_context>
chip_gen: v6e
topology: v6e:2x2x1
jax: 0.10.0
libtpu: 0.0.40
codegen_flags: <defaults>
</compile_context>

<pallas_src>
import functools

import jax
import jax.numpy as jnp
import numpy as np
from jax.experimental import pallas as pl
from jax.experimental.pallas import tpu as pltpu

EPS = 1e-6


def _ceil_to(x, m):
    return ((x + m - 1) // m) * m


# --------------------------------------------------------------------------
# Pallas kernels
# --------------------------------------------------------------------------
def _vn_lrelu(p, d, neg_slope, eps):
    """Vector LeakyReLU tail (shared by all linear kernels).

    p, d: [3, R, Cout].  out = p - (1-ns) * (dot<0) * (dot / (|d|^2+eps)) * d
    (identical to ns*p + (1-ns)*(mask*p + (1-mask)*(p - dot/|d|^2 * d))).
    """
    dot = jnp.sum(p * d, axis=0, keepdims=True)
    dnsq = jnp.sum(d * d, axis=0, keepdims=True)
    neg = (dot < 0.0).astype(jnp.float32)
    corr = dot * pl.reciprocal(dnsq + eps, approx=True)
    return p - (1.0 - neg_slope) * neg * corr * d


def _convpos_pool_kernel(x_ref, w_ref, pool_ref, o_ref, *, cout, neg_slope, eps):
    """Fused conv_pos (VNT linear + vector LeakyReLU) + mean over k neighbours.

    x_ref:   [3, tg*k, Cin]      (tg groups of k consecutive neighbour rows)
    w_ref:   [Cin, 2*Cout]       (wf || wd concatenated on the output axis)
    pool_ref:[tg, tg*k]          block-averaging matrix (1/k on each group)
    o_ref:   [3, tg, Cout]       pooled output
    """
    tgk = x_ref.shape[1]
    cin = x_ref.shape[2]
    x2d = x_ref[...].reshape(3 * tgk, cin)                       # tile-aligned merge
    y = jnp.dot(x2d, w_ref[...], preferred_element_type=jnp.float32)
    y = y.reshape(3, tgk, 2 * cout)
    out = _vn_lrelu(y[..., :cout], y[..., cout:], neg_slope, eps)
    pool = pool_ref[...]
    for v in range(3):                                           # 3 small MXU pools
        o_ref[v] = jnp.dot(pool, out[v],
                           preferred_element_type=jnp.float32).astype(o_ref.dtype)


def _lin_lrelu_kernel(x_ref, w_ref, o_ref, *, cout, neg_slope, eps):
    """VNT linear + vector LeakyReLU on a flat row tile.

    x_ref: [3, tm, Cin]   w_ref: [Cin, 2*Cout]   o_ref: [3, tm, Cout]
    """
    tm = x_ref.shape[1]
    cin = x_ref.shape[2]
    x2d = x_ref[...].reshape(3 * tm, cin)
    y = jnp.dot(x2d, w_ref[...], preferred_element_type=jnp.float32)
    y = y.reshape(3, tm, 2 * cout)
    out = _vn_lrelu(y[..., :cout], y[..., cout:], neg_slope, eps)
    o_ref[...] = out.astype(o_ref.dtype)


def _lin_lrelu_pooled_kernel(x_ref, pproj_ref, w_ref, o_ref, *, cout, neg_slope, eps):
    """VNT linear + LeakyReLU where the input is implicitly cat([net, pooled]).

    The pooled half of the weight is already applied to the (tiny) pooled
    tensor in the wrapper; its projection is broadcast-added here, so the
    [3, B*N, 2h] concat never exists.

    x_ref:     [3, 1, tn, Cin]
    pproj_ref: [3, 1, 1, 2*Cout]   (pooled @ W_pool for this batch element)
    w_ref:     [Cin, 2*Cout]       (W_net = wf_net || wd_net)
    o_ref:     [3, 1, tn, Cout]
    """
    tn = x_ref.shape[2]
    cin = x_ref.shape[3]
    x2d = x_ref[...].reshape(3 * tn, cin)
    y = jnp.dot(x2d, w_ref[...], preferred_element_type=jnp.float32)
    y = y.reshape(3, tn, 2 * cout)
    y = y + pproj_ref[...].reshape(3, 1, 2 * cout)               # sublane broadcast
    out = _vn_lrelu(y[..., :cout], y[..., cout:], neg_slope, eps)
    o_ref[...] = out.reshape(o_ref.shape).astype(o_ref.dtype)


def _mean_pool_kernel(x_ref, o_ref, *, inv_n):
    """Accumulating mean over the point axis.

    x_ref: [3, 1, tn, C]   o_ref: [3, 1, 1, C]  (revisited across grid axis 1)
    """
    @pl.when(pl.program_id(1) == 0)
    def _():
        o_ref[...] = jnp.zeros_like(o_ref)

    o_ref[...] += jnp.sum(x_ref[...], axis=2, keepdims=True) * inv_n


# --------------------------------------------------------------------------
# Pallas wrappers
# --------------------------------------------------------------------------
def vnt_convpos_kpool(feat, w, k, neg_slope=0.0):
    """feat: [3, G*k, Cin] (k consecutive rows per group); w: [Cin, 2*Cout].

    Returns pooled [3, G, Cout] (mean over each group of k rows), never
    materializing the un-pooled [3, G*k, Cout] tensor in HBM.
    """
    _, mk, cin = feat.shape
    g = mk // k
    cout = w.shape[1] // 2
    tg = max(8, (1024 // max(k, 1)) // 8 * 8)    # keep tile rows (tg*k) ~<= 1024
    tg = min(tg, _ceil_to(g, 8))
    gp = _ceil_to(g, tg)
    if gp != g:
        feat = feat.reshape(3, g, k, cin)
        feat = jnp.pad(feat, ((0, 0), (0, gp - g), (0, 0), (0, 0)))
        feat = feat.reshape(3, gp * k, cin)
    pool_mat = jnp.asarray(
        np.kron(np.eye(tg, dtype=np.float32), np.ones((1, k), np.float32)) / k)

    kernel = functools.partial(_convpos_pool_kernel, cout=cout,
                               neg_slope=neg_slope, eps=EPS)
    out = pl.pallas_call(
        kernel,
        out_shape=jax.ShapeDtypeStruct((3, gp, cout), jnp.float32),
        grid_spec=pltpu.PrefetchScalarGridSpec(
            num_scalar_prefetch=0,
            grid=(gp // tg,),
            in_specs=[
                pl.BlockSpec((3, tg * k, cin), lambda i: (0, i, 0)),
                pl.BlockSpec((cin, 2 * cout), lambda i: (0, 0)),
                pl.BlockSpec((tg, tg * k), lambda i: (0, 0)),
            ],
            out_specs=pl.BlockSpec((3, tg, cout), lambda i: (0, i, 0)),
        ),
        compiler_params=pltpu.CompilerParams(dimension_semantics=("parallel",)),
    )(feat, w, pool_mat)
    return out[:, :g, :]


def vnt_linear_leakyrelu(x, w, neg_slope=0.0):
    """x: [3, M, Cin]; w: [Cin, 2*Cout] (wf || wd). Returns [3, M, Cout]."""
    _, m, cin = x.shape
    cout = w.shape[1] // 2
    tm = min(512, _ceil_to(m, 8))
    mp = _ceil_to(m, tm)
    if mp != m:
        x = jnp.pad(x, ((0, 0), (0, mp - m), (0, 0)))

    kernel = functools.partial(_lin_lrelu_kernel, cout=cout,
                               neg_slope=neg_slope, eps=EPS)
    out = pl.pallas_call(
        kernel,
        out_shape=jax.ShapeDtypeStruct((3, mp, cout), jnp.float32),
        grid_spec=pltpu.PrefetchScalarGridSpec(
            num_scalar_prefetch=0,
            grid=(mp // tm,),
            in_specs=[
                pl.BlockSpec((3, tm, cin), lambda i: (0, i, 0)),
                pl.BlockSpec((cin, 2 * cout), lambda i: (0, 0)),
            ],
            out_specs=pl.BlockSpec((3, tm, cout), lambda i: (0, i, 0)),
        ),
        compiler_params=pltpu.CompilerParams(dimension_semantics=("parallel",)),
    )(x, w)
    return out[:, :m, :]


def vnt_linear_leakyrelu_pooled(x4, pproj, w_net, neg_slope=0.0):
    """x4: [3, B, N, Cin]; pproj: [3, B, 2*Cout]; w_net: [Cin, 2*Cout]."""
    _, b, n, cin = x4.shape
    cout = w_net.shape[1] // 2
    tn = min(512, _ceil_to(n, 8))
    np_ = _ceil_to(n, tn)
    if np_ != n:
        x4 = jnp.pad(x4, ((0, 0), (0, 0), (0, np_ - n), (0, 0)))
    pproj4 = pproj[:, :, None, :]                                # [3, B, 1, 2*Cout]

    kernel = functools.partial(_lin_lrelu_pooled_kernel, cout=cout,
                               neg_slope=neg_slope, eps=EPS)
    out = pl.pallas_call(
        kernel,
        out_shape=jax.ShapeDtypeStruct((3, b, np_, cout), jnp.float32),
        grid_spec=pltpu.PrefetchScalarGridSpec(
            num_scalar_prefetch=0,
            grid=(b, np_ // tn),
            in_specs=[
                pl.BlockSpec((3, 1, tn, cin), lambda bi, j: (0, bi, j, 0)),
                pl.BlockSpec((3, 1, 1, 2 * cout), lambda bi, j: (0, bi, 0, 0)),
                pl.BlockSpec((cin, 2 * cout), lambda bi, j: (0, 0)),
            ],
            out_specs=pl.BlockSpec((3, 1, tn, cout), lambda bi, j: (0, bi, j, 0)),
        ),
        compiler_params=pltpu.CompilerParams(
            dimension_semantics=("parallel", "parallel")),
    )(x4, pproj4, w_net)
    return out[:, :, :n, :]


def mean_pool_points(x4):
    """x4: [3, B, N, C] -> [3, B, C] (mean over N), tiled + accumulated."""
    _, b, n, c = x4.shape
    tn = min(512, _ceil_to(n, 8))
    np_ = _ceil_to(n, tn)
    if np_ != n:
        x4 = jnp.pad(x4, ((0, 0), (0, 0), (0, np_ - n), (0, 0)))

    kernel = functools.partial(_mean_pool_kernel, inv_n=1.0 / n)
    out = pl.pallas_call(
        kernel,
        out_shape=jax.ShapeDtypeStruct((3, b, 1, c), jnp.float32),
        grid_spec=pltpu.PrefetchScalarGridSpec(
            num_scalar_prefetch=0,
            grid=(b, np_ // tn),
            in_specs=[pl.BlockSpec((3, 1, tn, c), lambda bi, j: (0, bi, j, 0))],
            out_specs=pl.BlockSpec((3, 1, 1, c), lambda bi, j: (0, bi, 0, 0)),
        ),
        compiler_params=pltpu.CompilerParams(
            dimension_semantics=("parallel", "arbitrary")),
    )(x4)
    return out[:, :, 0, :]


# --------------------------------------------------------------------------
# Parameters, graph features, forward pass (plain-JAX glue)
# --------------------------------------------------------------------------
def _vnt_normalize(w):
    # TODO(synk): exact VNT `which_norm_VNT='norm'` internals are not in the
    # reference snippet; implemented as weight rows normalized to sum to 1
    # (the standard translation-equivariance-preserving VN-T construction).
    return w / jnp.sum(w, axis=1, keepdims=True)


def _concat_weights(layer_params):
    """PyTorch Linear weights [out, in] -> concatenated [in, 2*out] = wf||wd."""
    wf = _vnt_normalize(layer_params["wf"]).T
    wd = _vnt_normalize(layer_params["wd"]).T
    return jnp.concatenate([wf, wd], axis=1)


def init_params(key, hidden_dim=128):
    """Deterministic synthetic init. PyTorch Linear weight shape is [out, in]."""
    def linear_w(k_, cout, cin):
        return (1.0 + 0.3 * jax.random.normal(k_, (cout, cin), jnp.float32)) / cin

    keys = jax.random.split(key, 8)
    h = hidden_dim
    return {
        "conv_pos": {"wf": linear_w(keys[0], 64, 3), "wd": linear_w(keys[1], 64, 3)},
        "conv1": {"wf": linear_w(keys[2], h, 64), "wd": linear_w(keys[3], h, 64)},
        "conv2": {"wf": linear_w(keys[4], h, 2 * h), "wd": linear_w(keys[5], h, 2 * h)},
        "conv3": {"wf": linear_w(keys[6], h, 2 * h), "wd": linear_w(keys[7], h, 2 * h)},
    }


def get_graph_feature_cross(p_bn3, k):
    """p_bn3: [B, N, 3] -> features [3vec, B*N*k, 3ch], k rows per (b, n) group."""
    B, N, _ = p_bn3.shape
    x = jnp.transpose(p_bn3, (0, 2, 1))                        # [B, 3, N]
    inner = jnp.einsum("bdn,bdm->bnm", x, x)
    xx = jnp.sum(x * x, axis=1)
    pdist = 2.0 * inner - xx[:, :, None] - xx[:, None, :]      # -||xi - xj||^2
    idx = jax.lax.top_k(pdist, k)[1]                           # [B, N, k]
    nbrs = jax.vmap(lambda pts, id_: pts[id_])(p_bn3, idx)     # [B, N, k, 3]
    ctr = jnp.broadcast_to(p_bn3[:, :, None, :], nbrs.shape)
    cross = jnp.cross(nbrs, ctr, axis=-1)
    feat = jnp.stack([nbrs - ctr, ctr, cross], axis=3)         # [B, N, k, 3ch, 3vec]
    feat = jnp.transpose(feat, (4, 0, 1, 2, 3))                # [3vec, B, N, k, 3ch]
    return feat.reshape(3, B * N * k, 3)


def vnt_simple_pointnet_forward(params, p, k=20, hidden_dim=128, neg_slope=0.0):
    """p: [B, N, 3] -> [B, hidden_dim, 3] (rotation-equivariant latent)."""
    B, N, _ = p.shape
    h = hidden_dim

    feat = get_graph_feature_cross(p, k)                       # [3, B*N*k, 3]

    # conv_pos + mean over k neighbours, fused.
    net = vnt_convpos_kpool(feat, _concat_weights(params["conv_pos"]),
                            k, neg_slope)                      # [3, B*N, 64]

    # conv1.
    net = vnt_linear_leakyrelu(net, _concat_weights(params["conv1"]),
                               neg_slope)                      # [3, B*N, h]
    net4 = net.reshape(3, B, N, h)

    # conv2 / conv3: split-weight formulation, no concat materialization.
    for layer in ("conv2", "conv3"):
        pooled = mean_pool_points(net4)                        # [3, B, h]
        w = _concat_weights(params[layer])                     # [2h, 2h]
        w_net, w_pool = w[:h], w[h:]
        pproj = jnp.einsum("vbc,co->vbo", pooled, w_pool,
                           precision=jax.lax.Precision.HIGHEST)  # [3, B, 2h] tiny
        net4 = vnt_linear_leakyrelu_pooled(net4, pproj, w_net, neg_slope)

    net = mean_pool_points(net4)                               # [3, B, h]

    # TODO(synk): in the reference, the fc_pos/fc_0..3/fc_c branch is dead code
    # (a string literal) and `return c` references an undefined name; we return
    # the last live value (mean-pooled conv3 features) as [B, hidden_dim, 3].
    return jnp.transpose(net, (1, 2, 0))


# --------------------------------------------------------------------------
# Pure-JAX reference (correctness check)
# --------------------------------------------------------------------------
def _ref_lin_lrelu(x, wf, wd, neg_slope=0.0):
    p = jnp.einsum("v...c,co->v...o", x, wf, precision=jax.lax.Precision.HIGHEST)
    d = jnp.einsum("v...c,co->v...o", x, wd, precision=jax.lax.Precision.HIGHEST)
    dot = jnp.sum(p * d, axis=0, keepdims=True)
    dnsq = jnp.sum(d * d, axis=0, keepdims=True)
    mask = (dot >= 0.0).astype(jnp.float32)
    return neg_slope * p + (1.0 - neg_slope) * (
        mask * p + (1.0 - mask) * (p - (dot / (dnsq + EPS)) * d))


def _ref_forward(params, p, k=20, hidden_dim=128, neg_slope=0.0):
    B, N, _ = p.shape
    h = hidden_dim

    def w(layer):
        return (_vnt_normalize(params[layer]["wf"]).T,
                _vnt_normalize(params[layer]["wd"]).T)

    feat = get_graph_feature_cross(p, k).reshape(3, B, N, k, 3)
    net = _ref_lin_lrelu(feat, *w("conv_pos"), neg_slope)      # [3,B,N,k,64]
    net = jnp.mean(net, axis=3)                                # [3,B,N,64]
    net = _ref_lin_lrelu(net, *w("conv1"), neg_slope)          # [3,B,N,h]
    for layer in ("conv2", "conv3"):
        pooled = jnp.mean(net, axis=2, keepdims=True)
        cat = jnp.concatenate([net, jnp.broadcast_to(pooled, net.shape)], axis=-1)
        net = _ref_lin_lrelu(cat, *w(layer), neg_slope)
    net = jnp.mean(net, axis=2)                                # [3,B,h]
    return jnp.transpose(net, (1, 2, 0))


# --------------------------------------------------------------------------
# Demo
# --------------------------------------------------------------------------
if __name__ == "__main__":
    B, N, k, hidden_dim = 2, 16, 4, 32
    key = jax.random.PRNGKey(0)
    pkey, wkey = jax.random.split(key)
    p = jax.random.normal(pkey, (B, N, 3), jnp.float32)
    params = init_params(wkey, hidden_dim=hidden_dim)

    out = vnt_simple_pointnet_forward(params, p, k=k, hidden_dim=hidden_dim)
    out = jax.block_until_ready(out)
    assert out.shape == (B, hidden_dim, 3), out.shape

    ref = _ref_forward(params, p, k=k, hidden_dim=hidden_dim)
    ref = jax.block_until_ready(ref)
    np.testing.assert_allclose(np.asarray(out), np.asarray(ref), rtol=2e-2, atol=2e-2)

    print("KERNEL_OK")
</pallas_src>

<mosaic_0001>
module attributes {stable_mosaic.version = 11 : i64} {
  func.func @_convpos_pool_kernel(%arg0: i32, %arg1: memref<3x128x3xf32, #tpu.memory_space<vmem>>, %arg2: memref<3x128xf32, #tpu.memory_space<vmem>>, %arg3: memref<32x128xf32, #tpu.memory_space<vmem>>, %arg4: memref<3x32x64xf32, #tpu.memory_space<vmem>>) attributes {dimension_semantics = [#tpu.dimension_semantics<parallel>], iteration_bounds = array<i64: 1>, scalar_prefetch = 0 : i64, scratch_operands = 0 : i64, tpu.core_type = #tpu.core_type<tc>, window_params = [{transform_indices = @transform_0, window_bounds = array<i64: 3, 128, 3>}, {pipeline_mode = #tpu.pipeline_mode<synchronous>, transform_indices = @transform_1, window_bounds = array<i64: 3, 128>}, {pipeline_mode = #tpu.pipeline_mode<synchronous>, transform_indices = @transform_2, window_bounds = array<i64: 32, 128>}, {transform_indices = @transform_3, window_bounds = array<i64: 3, 32, 64>}]} {
    %c0 = arith.constant 0 : index
    %c0_0 = arith.constant 0 : index
    %c0_1 = arith.constant 0 : index
    %0 = vector.load %arg1[%c0, %c0_0, %c0_1] : memref<3x128x3xf32, #tpu.memory_space<vmem>>, vector<3x128x3xf32>
    %1 = vector.shape_cast %0 : vector<3x128x3xf32> to vector<384x3xf32>
    %c0_2 = arith.constant 0 : index
    %c0_3 = arith.constant 0 : index
    %2 = vector.load %arg2[%c0_2, %c0_3] : memref<3x128xf32, #tpu.memory_space<vmem>>, vector<3x128xf32>
    %cst = arith.constant dense<0.000000e+00> : vector<384x128xf32>
    %3 = tpu.matmul %1, %2, %cst {dimension_numbers = #tpu.dot_dimension_numbers<[1], [0], [0], [1], [0, 0, 1, 1], [], []>} : vector<384x3xf32>, vector<3x128xf32>, vector<384x128xf32> -> vector<384x128xf32>
    %4 = vector.shape_cast %3 : vector<384x128xf32> to vector<3x128x128xf32>
    %5 = vector.extract_strided_slice %4 {offsets = [0, 0, 0], sizes = [3, 128, 64], strides = [1, 1, 1]} : vector<3x128x128xf32> to vector<3x128x64xf32>
    %6 = vector.extract_strided_slice %4 {offsets = [0, 0, 64], sizes = [3, 128, 64], strides = [1, 1, 1]} : vector<3x128x128xf32> to vector<3x128x64xf32>
    %7 = arith.mulf %5, %6 : vector<3x128x64xf32>
    %cst_4 = arith.constant dense<0.000000e+00> : vector<128x64xf32>
    %8 = vector.multi_reduction <add>, %7, %cst_4 [0] : vector<3x128x64xf32> to vector<128x64xf32>
    %9 = vector.shape_cast %8 : vector<128x64xf32> to vector<1x128x64xf32>
    %10 = arith.mulf %6, %6 : vector<3x128x64xf32>
    %cst_5 = arith.constant dense<0.000000e+00> : vector<128x64xf32>
    %11 = vector.multi_reduction <add>, %10, %cst_5 [0] : vector<3x128x64xf32> to vector<128x64xf32>
    %12 = vector.shape_cast %11 : vector<128x64xf32> to vector<1x128x64xf32>
    %cst_6 = arith.constant 0.000000e+00 : f32
    %13 = vector.broadcast %cst_6 : f32 to vector<1x128x64xf32>
    %14 = arith.cmpf olt, %9, %13 : vector<1x128x64xf32>
    %15 = arith.extui %14 : vector<1x128x64xi1> to vector<1x128x64xi32>
    %16 = arith.sitofp %15 : vector<1x128x64xi32> to vector<1x128x64xf32>
    %cst_7 = arith.constant 9.99999997E-7 : f32
    %17 = vector.broadcast %cst_7 : f32 to vector<1x128x64xf32>
    %18 = arith.addf %12, %17 : vector<1x128x64xf32>
    %19 = tpu.reciprocal %18 {approx = true} : vector<1x128x64xf32> -> vector<1x128x64xf32>
    %20 = arith.mulf %9, %19 : vector<1x128x64xf32>
    %cst_8 = arith.constant 1.000000e+00 : f32
    %21 = vector.broadcast %cst_8 : f32 to vector<1x128x64xf32>
    %22 = arith.mulf %21, %16 : vector<1x128x64xf32>
    %23 = arith.mulf %22, %20 : vector<1x128x64xf32>
    %24 = vector.broadcast %23 : vector<1x128x64xf32> to vector<3x128x64xf32>
    %25 = arith.mulf %24, %6 : vector<3x128x64xf32>
    %26 = arith.subf %5, %25 : vector<3x128x64xf32>
    %c0_9 = arith.constant 0 : index
    %c0_10 = arith.constant 0 : index
    %27 = vector.load %arg3[%c0_9, %c0_10] : memref<32x128xf32, #tpu.memory_space<vmem>>, vector<32x128xf32>
    %28 = vector.extract_strided_slice %26 {offsets = [0, 0, 0], sizes = [1, 128, 64], strides = [1, 1, 1]} : vector<3x128x64xf32> to vector<1x128x64xf32>
    %29 = vector.shape_cast %28 : vector<1x128x64xf32> to vector<128x64xf32>
    %cst_11 = arith.constant dense<0.000000e+00> : vector<32x64xf32>
    %30 = tpu.matmul %27, %29, %cst_11 {dimension_numbers = #tpu.dot_dimension_numbers<[1], [0], [0], [1], [0, 0, 1, 1], [], []>} : vector<32x128xf32>, vector<128x64xf32>, vector<32x64xf32> -> vector<32x64xf32>
    %c0_12 = arith.constant 0 : index
    %c0_13 = arith.constant 0 : index
    %c0_14 = arith.constant 0 : index
    %31 = vector.load %arg4[%c0_12, %c0_13, %c0_14] : memref<3x32x64xf32, #tpu.memory_space<vmem>>, vector<1x32x64xf32>
    %32 = vector.shape_cast %31 : vector<1x32x64xf32> to vector<32x64xf32>
    %33 = vector.shape_cast %30 : vector<32x64xf32> to vector<1x32x64xf32>
    tpu.vector_store %arg4[%c0_12, %c0_13, %c0_14], %33 {strides = array<i32>} : memref<3x32x64xf32, #tpu.memory_space<vmem>>, vector<1x32x64xf32>,
    %34 = vector.extract_strided_slice %26 {offsets = [1, 0, 0], sizes = [1, 128, 64], strides = [1, 1, 1]} : vector<3x128x64xf32> to vector<1x128x64xf32>
    %35 = vector.shape_cast %34 : vector<1x128x64xf32> to vector<128x64xf32>
    %cst_15 = arith.constant dense<0.000000e+00> : vector<32x64xf32>
    %36 = tpu.matmul %27, %35, %cst_15 {dimension_numbers = #tpu.dot_dimension_numbers<[1], [0], [0], [1], [0, 0, 1, 1], [], []>} : vector<32x128xf32>, vector<128x64xf32>, vector<32x64xf32> -> vector<32x64xf32>
    %c1 = arith.constant 1 : index
    %c0_16 = arith.constant 0 : index
    %c0_17 = arith.constant 0 : index
    %37 = vector.load %arg4[%c1, %c0_16, %c0_17] : memref<3x32x64xf32, #tpu.memory_space<vmem>>, vector<1x32x64xf32>
    %38 = vector.shape_cast %37 : vector<1x32x64xf32> to vector<32x64xf32>
    %39 = vector.shape_cast %36 : vector<32x64xf32> to vector<1x32x64xf32>
    tpu.vector_store %arg4[%c1, %c0_16, %c0_17], %39 {strides = array<i32>} : memref<3x32x64xf32, #tpu.memory_space<vmem>>, vector<1x32x64xf32>,
    %40 = vector.extract_strided_slice %26 {offsets = [2, 0, 0], sizes = [1, 128, 64], strides = [1, 1, 1]} : vector<3x128x64xf32> to vector<1x128x64xf32>
    %41 = vector.shape_cast %40 : vector<1x128x64xf32> to vector<128x64xf32>
    %cst_18 = arith.constant dense<0.000000e+00> : vector<32x64xf32>
    %42 = tpu.matmul %27, %41, %cst_18 {dimension_numbers = #tpu.dot_dimension_numbers<[1], [0], [0], [1], [0, 0, 1, 1], [], []>} : vector<32x128xf32>, vector<128x64xf32>, vector<32x64xf32> -> vector<32x64xf32>
    %c2 = arith.constant 2 : index
    %c0_19 = arith.constant 0 : index
    %c0_20 = arith.constant 0 : index
    %43 = vector.load %arg4[%c2, %c0_19, %c0_20] : memref<3x32x64xf32, #tpu.memory_space<vmem>>, vector<1x32x64xf32>
    %44 = vector.shape_cast %43 : vector<1x32x64xf32> to vector<32x64xf32>
    %45 = vector.shape_cast %42 : vector<32x64xf32> to vector<1x32x64xf32>
    tpu.vector_store %arg4[%c2, %c0_19, %c0_20], %45 {strides = array<i32>} : memref<3x32x64xf32, #tpu.memory_space<vmem>>, vector<1x32x64xf32>,
    return
  }
  func.func @transform_0(%arg0: i32) -> (i32, i32, i32) {
    %c0_i32 = arith.constant 0 : i32
    %c0_i32_0 = arith.constant 0 : i32
    %c0_i32_1 = arith.constant 0 : i32
    return %c0_i32, %arg0, %c0_i32_0 : i32, i32, i32
  }
  func.func @transform_1(%arg0: i32) -> (i32, i32) {
    %c0_i32 = arith.constant 0 : i32
    %c0_i32_0 = arith.constant 0 : i32
    %c0_i32_1 = arith.constant 0 : i32
    return %c0_i32, %c0_i32_0 : i32, i32
  }
  func.func @transform_2(%arg0: i32) -> (i32, i32) {
    %c0_i32 = arith.constant 0 : i32
    %c0_i32_0 = arith.constant 0 : i32
    %c0_i32_1 = arith.constant 0 : i32
    return %c0_i32, %c0_i32_0 : i32, i32
  }
  func.func @transform_3(%arg0: i32) -> (i32, i32, i32) {
    %c0_i32 = arith.constant 0 : i32
    %c0_i32_0 = arith.constant 0 : i32
    %c0_i32_1 = arith.constant 0 : i32
    return %c0_i32, %arg0, %c0_i32_0 : i32, i32, i32
  }
}

</mosaic_0001>

<llo_original>
// kernel: tpu_custom_call.1
$region0: #{tpu_custom_call.1}
  #allocation0 [shape = 'u32[]', space=smem, size = 0x4, offset = 0x4, fixed_abs, tag = 'smem constant byte address 0x4 - core index']
  #allocation1 [shape = 'u32[144,128]{1,0:T(1,128)}', space=vmem, size = 0x12000, scoped, tag = 'internal scratch']
  %s0 = inlined_call_operand.vmem [shape: f32[3,128,3], index: 0, kind: input, shape index: {}]
  %s1 = inlined_call_operand.vmem [shape: f32[3,128], index: 1, kind: input, shape index: {}]
  %s2 = inlined_call_operand.vmem [shape: f32[32,128], index: 2, kind: input, shape index: {}]
  %s3 = inlined_call_operand.hbm [shape: f32[3,32,64], index: 3, kind: output, shape index: {}]
  %s4 = sld [smem:[#allocation0]]
  $region22: #{tpu_custom_call.1} parent=0
    _
  %s6 = ssub.s32 1, %s4
  %s7 = scalar_select 0, %s6, %s4
  $region1: #{tpu_custom_call.1} parent=0
    #allocation2 [shape = 'u8[49152]{0}', space=vmem, size = 0xc000, scoped, tag = 'output window, operand 0, single buffered']
    #allocation3 [shape = 's32[1]{0}', space=sflag, size = 0x4, scoped, tag = 'scoped memory for tpu_custom_call.1']
    %8 = vsyncpa [#allocation3], 0
    // Predicated region
    $region2: #{tpu_custom_call.1} parent=1 // pred_check
      _
    $region3: #{tpu_custom_call.1} parent=1 // pred_check_branch
      %10 = sbr.rel (0) target = $region5
    $region4: #{tpu_custom_call.1} parent=1 // pred_region
      _
    $region5: #{tpu_custom_call.1} parent=1 // pred_fallthru
      _
    // Predicated region
    $region6: #{tpu_custom_call.1} parent=1 // pred_check
      _
    $region7: #{tpu_custom_call.1} parent=1 // pred_check_branch
      %12 = sbr.rel (0) target = $region9
    $region8: #{tpu_custom_call.1} parent=1 // pred_region
      _
    $region9: #{tpu_custom_call.1} parent=1 // pred_fallthru
      _
    // Predicated region
    $region10: #{tpu_custom_call.1} parent=1 // pred_check
      _
    $region11: #{tpu_custom_call.1} parent=1 // pred_check_branch
      %14 = sbr.rel (0) target = $region13
    $region12: #{tpu_custom_call.1} parent=1 // pred_region
      _
    $region13: #{tpu_custom_call.1} parent=1 // pred_fallthru
      _
    %v15 = vld [vmem:[%s0] sm:$0xff]
    %v16 = vld [vmem:[%s0 + $0x8] sm:$0xff]
    %v17 = vld [vmem:[%s0 + $0x10] sm:$0xff]
    %v18 = vld [vmem:[%s0 + $0x18] sm:$0xff]
    %v19 = vld [vmem:[%s0 + $0x20] sm:$0xff]
    %v20 = vld [vmem:[%s0 + $0x28] sm:$0xff]
    %v21 = vld [vmem:[%s0 + $0x30] sm:$0xff]
    %v22 = vld [vmem:[%s0 + $0x38] sm:$0xff]
    %v23 = vld [vmem:[%s0 + $0x40] sm:$0xff]
    %v24 = vld [vmem:[%s0 + $0x48] sm:$0xff]
    %v25 = vld [vmem:[%s0 + $0x50] sm:$0xff]
    %v26 = vld [vmem:[%s0 + $0x58] sm:$0xff]
    %v27 = vld [vmem:[%s0 + $0x60] sm:$0xff]
    %v28 = vld [vmem:[%s0 + $0x68] sm:$0xff]
    %v29 = vld [vmem:[%s0 + $0x70] sm:$0xff]
    %v30 = vld [vmem:[%s0 + $0x78] sm:$0xff]
    %v31 = vld [vmem:[%s0 + $0x80] sm:$0xff]
    %v32 = vld [vmem:[%s0 + $0x88] sm:$0xff]
    %v33 = vld [vmem:[%s0 + $0x90] sm:$0xff]
    %v34 = vld [vmem:[%s0 + $0x98] sm:$0xff]
    %v35 = vld [vmem:[%s0 + $0xa0] sm:$0xff]
    %v36 = vld [vmem:[%s0 + $0xa8] sm:$0xff]
    %v37 = vld [vmem:[%s0 + $0xb0] sm:$0xff]
    %v38 = vld [vmem:[%s0 + $0xb8] sm:$0xff]
    %v39 = vld [vmem:[%s0 + $0xc0] sm:$0xff]
    %v40 = vld [vmem:[%s0 + $0xc8] sm:$0xff]
    %v41 = vld [vmem:[%s0 + $0xd0] sm:$0xff]
    %v42 = vld [vmem:[%s0 + $0xd8] sm:$0xff]
    %v43 = vld [vmem:[%s0 + $0xe0] sm:$0xff]
    %v44 = vld [vmem:[%s0 + $0xe8] sm:$0xff]
    %v45 = vld [vmem:[%s0 + $0xf0] sm:$0xff]
    %v46 = vld [vmem:[%s0 + $0xf8] sm:$0xff]
    %v47 = vld [vmem:[%s0 + $0x100] sm:$0xff]
    %v48 = vld [vmem:[%s0 + $0x108] sm:$0xff]
    %v49 = vld [vmem:[%s0 + $0x110] sm:$0xff]
    %v50 = vld [vmem:[%s0 + $0x118] sm:$0xff]
    %v51 = vld [vmem:[%s0 + $0x120] sm:$0xff]
    %v52 = vld [vmem:[%s0 + $0x128] sm:$0xff]
    %v53 = vld [vmem:[%s0 + $0x130] sm:$0xff]
    %v54 = vld [vmem:[%s0 + $0x138] sm:$0xff]
    %v55 = vld [vmem:[%s0 + $0x140] sm:$0xff]
    %v56 = vld [vmem:[%s0 + $0x148] sm:$0xff]
    %v57 = vld [vmem:[%s0 + $0x150] sm:$0xff]
    %v58 = vld [vmem:[%s0 + $0x158] sm:$0xff]
    %v59 = vld [vmem:[%s0 + $0x160] sm:$0xff]
    %v60 = vld [vmem:[%s0 + $0x168] sm:$0xff]
    %v61 = vld [vmem:[%s0 + $0x170] sm:$0xff]
    %v62 = vld [vmem:[%s0 + $0x178] sm:$0xff]
    %v63 = vld [vmem:[%s1] sm:$0x7]
    %vm64 = vcmask 23552
    %v66 = vsel %vm64, %v15, 0
    %v69 = vsel %vm64, %v16, 0
    %v72 = vsel %vm64, %v17, 0
    %v75 = vsel %vm64, %v18, 0
    %v78 = vsel %vm64, %v19, 0
    %v81 = vsel %vm64, %v20, 0
    %v84 = vsel %vm64, %v21, 0
    %v87 = vsel %vm64, %v22, 0
    %v90 = vsel %vm64, %v23, 0
    %v93 = vsel %vm64, %v24, 0
    %v96 = vsel %vm64, %v25, 0
    %v99 = vsel %vm64, %v26, 0
    %v102 = vsel %vm64, %v27, 0
    %v105 = vsel %vm64, %v28, 0
    %v108 = vsel %vm64, %v29, 0
    %v111 = vsel %vm64, %v30, 0
    %v114 = vsel %vm64, %v31, 0
    %v117 = vsel %vm64, %v32, 0
    %v120 = vsel %vm64, %v33, 0
    %v123 = vsel %vm64, %v34, 0
    %v126 = vsel %vm64, %v35, 0
    %v129 = vsel %vm64, %v36, 0
    %v132 = vsel %vm64, %v37, 0
    %v135 = vsel %vm64, %v38, 0
    %v138 = vsel %vm64, %v39, 0
    %v141 = vsel %vm64, %v40, 0
    %v144 = vsel %vm64, %v41, 0
    %v147 = vsel %vm64, %v42, 0
    %v150 = vsel %vm64, %v43, 0
    %v153 = vsel %vm64, %v44, 0
    %v156 = vsel %vm64, %v45, 0
    %v159 = vsel %vm64, %v46, 0
    %v162 = vsel %vm64, %v47, 0
    %v165 = vsel %vm64, %v48, 0
    %v168 = vsel %vm64, %v49, 0
    %v171 = vsel %vm64, %v50, 0
    %v174 = vsel %vm64, %v51, 0
    %v177 = vsel %vm64, %v52, 0
    %v180 = vsel %vm64, %v53, 0
    %v183 = vsel %vm64, %v54, 0
    %v186 = vsel %vm64, %v55, 0
    %v189 = vsel %vm64, %v56, 0
    %v192 = vsel %vm64, %v57, 0
    %v195 = vsel %vm64, %v58, 0
    %v198 = vsel %vm64, %v59, 0
    %v201 = vsel %vm64, %v60, 0
    %v204 = vsel %vm64, %v61, 0
    %v207 = vsel %vm64, %v62, 0
    %vm209 = vcmask 1042432
    %v211 = vsel %vm209, %v63, 0
    %213 = vmatprep.subr.mxu0 0.0
    %214 = vmatpush1.msra.mxu0 0.0
    %215 = vmatprep.subr.mxu0 0.0
    %216 = vmatpush1.msra.mxu0 0.0
    %217 = vmatprep.subr.mxu0 0.0
    %218 = vmatpush1.msra.mxu0 0.0
    %219 = vmatprep.subr.mxu0 0.0
    %220 = vmatpush1.msra.mxu0 0.0
    %221 = vmatprep.subr.mxu0 0.0
    %222 = vmatpush1.msra.mxu0 0.0
    %223 = vmatprep.subr.mxu0 0.0
    %224 = vmatpush1.msra.mxu0 0.0
    %225 = vmatprep.subr.mxu0 0.0
    %226 = vmatpush1.msra.mxu0 0.0
    %227 = vmatprep.subr.mxu0 0.0
    %228 = vmatpush1.msra.mxu0 0.0
    %229 = vmatprep.subr.mxu0 0.0
    %230 = vmatpush1.msra.mxu0 0.0
    %231 = vmatprep.subr.mxu0 0.0
    %232 = vmatpush1.msra.mxu0 0.0
    %233 = vmatprep.subr.mxu0 0.0
    %234 = vmatpush1.msra.mxu0 0.0
    %235 = vmatprep.subr.mxu0 0.0
    %236 = vmatpush1.msra.mxu0 0.0
    %237 = vmatprep.subr.mxu0 0.0
    %238 = vmatpush1.msra.mxu0 0.0
    %239 = vmatprep.subr.mxu0 0.0
    %240 = vmatpush1.msra.mxu0 0.0
    %241 = vmatprep.subr.mxu0 0.0
    %242 = vmatpush1.msra.mxu0 0.0
    %243 = vmatprep.subr.mxu0 0.0
    %244 = vmatpush1.msra.mxu0 %v211
    %245 = vmatprep.subr.mxu0 0.0
    %246 = vmatpush2.msra.mxu0 0.0
    %247 = vmatprep.subr.mxu0 0.0
    %248 = vmatpush2.msra.mxu0 0.0
    %249 = vmatprep.subr.mxu0 0.0
    %250 = vmatpush2.msra.mxu0 0.0
    %251 = vmatprep.subr.mxu0 0.0
    %252 = vmatpush2.msra.mxu0 0.0
    %253 = vmatprep.subr.mxu0 0.0
    %254 = vmatpush2.msra.mxu0 0.0
    %255 = vmatprep.subr.mxu0 0.0
    %256 = vmatpush2.msra.mxu0 0.0
    %257 = vmatprep.subr.mxu0 0.0
    %258 = vmatpush2.msra.mxu0 0.0
    %259 = vmatprep.subr.mxu0 0.0
    %260 = vmatpush2.msra.mxu0 0.0
    %261 = vmatprep.subr.mxu0 0.0
    %262 = vmatpush2.msra.mxu0 0.0
    %263 = vmatprep.subr.mxu0 0.0
    %264 = vmatpush2.msra.mxu0 0.0
    %265 = vmatprep.subr.mxu0 0.0
    %266 = vmatpush2.msra.mxu0 0.0
    %267 = vmatprep.subr.mxu0 0.0
    %268 = vmatpush2.msra.mxu0 0.0
    %269 = vmatprep.subr.mxu0 0.0
    %270 = vmatpush2.msra.mxu0 0.0
    %271 = vmatprep.subr.mxu0 0.0
    %272 = vmatpush2.msra.mxu0 0.0
    %273 = vmatprep.subr.mxu0 0.0
    %274 = vmatpush2.msra.mxu0 0.0
    %275 = vmatprep.subr.mxu0 0.0
    %276 = vmatpush2.msra.mxu0 0.0
    %277 = vmatprep.mubr.f32.mxu0 0.0
    %278 = vmatmul.mubr.f32.gmra.mxu0 %v66
    %v279 = vpop.f32.mrf.mxu0
    %v280 = vadd.f32 0.0, %v279
    %v281 = vpop.f32.mrf.mxu0
    %282 = vmatprep.mubr.f32.mxu0 0.0
    %283 = vmatmul.mubr.f32.gmra.mxu0 %v69
    %v284 = vpop.f32.mrf.mxu0
    %v285 = vadd.f32 0.0, %v284
    %v286 = vpop.f32.mrf.mxu0
    %287 = vmatprep.mubr.f32.mxu0 0.0
    %288 = vmatmul.mubr.f32.gmra.mxu0 %v72
    %v289 = vpop.f32.mrf.mxu0
    %v290 = vadd.f32 0.0, %v289
    %v291 = vpop.f32.mrf.mxu0
    %292 = vmatprep.mubr.f32.mxu0 0.0
    %293 = vmatmul.mubr.f32.gmra.mxu0 %v75
    %v294 = vpop.f32.mrf.mxu0
    %v295 = vadd.f32 0.0, %v294
    %v296 = vpop.f32.mrf.mxu0
    %297 = vmatprep.mubr.f32.mxu0 0.0
    %298 = vmatmul.mubr.f32.gmra.mxu0 %v78
    %v299 = vpop.f32.mrf.mxu0
    %v300 = vadd.f32 0.0, %v299
    %v301 = vpop.f32.mrf.mxu0
    %302 = vmatprep.mubr.f32.mxu0 0.0
    %303 = vmatmul.mubr.f32.gmra.mxu0 %v81
    %v304 = vpop.f32.mrf.mxu0
    %v305 = vadd.f32 0.0, %v304
    %v306 = vpop.f32.mrf.mxu0
    %307 = vmatprep.mubr.f32.mxu0 0.0
    %308 = vmatmul.mubr.f32.gmra.mxu0 %v84
    %v309 = vpop.f32.mrf.mxu0
    %v310 = vadd.f32 0.0, %v309
    %v311 = vpop.f32.mrf.mxu0
    %312 = vmatprep.mubr.f32.mxu0 0.0
    %313 = vmatmul.mubr.f32.gmra.mxu0 %v87
    %v314 = vpop.f32.mrf.mxu0
    %v315 = vadd.f32 0.0, %v314
    %v316 = vpop.f32.mrf.mxu0
    %317 = vmatprep.mubr.f32.mxu0 0.0
    %318 = vmatmul.mubr.f32.gmra.mxu0 %v90
    %v319 = vpop.f32.mrf.mxu0
    %v320 = vadd.f32 0.0, %v319
    %v321 = vpop.f32.mrf.mxu0
    %322 = vmatprep.mubr.f32.mxu0 0.0
    %323 = vmatmul.mubr.f32.gmra.mxu0 %v93
    %v324 = vpop.f32.mrf.mxu0
    %v325 = vadd.f32 0.0, %v324
    %v326 = vpop.f32.mrf.mxu0
    %327 = vmatprep.mubr.f32.mxu0 0.0
    %328 = vmatmul.mubr.f32.gmra.mxu0 %v96
    %v329 = vpop.f32.mrf.mxu0
    %v330 = vadd.f32 0.0, %v329
    %v331 = vpop.f32.mrf.mxu0
    %332 = vmatprep.mubr.f32.mxu0 0.0
    %333 = vmatmul.mubr.f32.gmra.mxu0 %v99
    %v334 = vpop.f32.mrf.mxu0
    %v335 = vadd.f32 0.0, %v334
    %v336 = vpop.f32.mrf.mxu0
    %337 = vmatprep.mubr.f32.mxu0 0.0
    %338 = vmatmul.mubr.f32.gmra.mxu0 %v102
    %v339 = vpop.f32.mrf.mxu0
    %v340 = vadd.f32 0.0, %v339
    %v341 = vpop.f32.mrf.mxu0
    %342 = vmatprep.mubr.f32.mxu0 0.0
    %343 = vmatmul.mubr.f32.gmra.mxu0 %v105
    %v344 = vpop.f32.mrf.mxu0
    %v345 = vadd.f32 0.0, %v344
    %v346 = vpop.f32.mrf.mxu0
    %347 = vmatprep.mubr.f32.mxu0 0.0
    %348 = vmatmul.mubr.f32.gmra.mxu0 %v108
    %v349 = vpop.f32.mrf.mxu0
    %v350 = vadd.f32 0.0, %v349
    %v351 = vpop.f32.mrf.mxu0
    %352 = vmatprep.mubr.f32.mxu0 0.0
    %353 = vmatmul.mubr.f32.gmra.mxu0 %v111
    %v354 = vpop.f32.mrf.mxu0
    %v355 = vadd.f32 0.0, %v354
    %v356 = vpop.f32.mrf.mxu0
    %357 = vmatprep.mubr.f32.mxu0 0.0
    %358 = vmatmul.mubr.f32.gmra.mxu0 %v114
    %v359 = vpop.f32.mrf.mxu0
    %v360 = vadd.f32 0.0, %v359
    %v361 = vpop.f32.mrf.mxu0
    %362 = vmatprep.mubr.f32.mxu0 0.0
    %363 = vmatmul.mubr.f32.gmra.mxu0 %v117
    %v364 = vpop.f32.mrf.mxu0
    %v365 = vadd.f32 0.0, %v364
    %v366 = vpop.f32.mrf.mxu0
    %367 = vmatprep.mubr.f32.mxu0 0.0
    %368 = vmatmul.mubr.f32.gmra.mxu0 %v120
    %v369 = vpop.f32.mrf.mxu0
    %v370 = vadd.f32 0.0, %v369
    %v371 = vpop.f32.mrf.mxu0
    %372 = vmatprep.mubr.f32.mxu0 0.0
    %373 = vmatmul.mubr.f32.gmra.mxu0 %v123
    %v374 = vpop.f32.mrf.mxu0
    %v375 = vadd.f32 0.0, %v374
    %v376 = vpop.f32.mrf.mxu0
    %377 = vmatprep.mubr.f32.mxu0 0.0
    %378 = vmatmul.mubr.f32.gmra.mxu0 %v126
    %v379 = vpop.f32.mrf.mxu0
    %v380 = vadd.f32 0.0, %v379
    %v381 = vpop.f32.mrf.mxu0
    %382 = vmatprep.mubr.f32.mxu0 0.0
    %383 = vmatmul.mubr.f32.gmra.mxu0 %v129
    %v384 = vpop.f32.mrf.mxu0
    %v385 = vadd.f32 0.0, %v384
    %v386 = vpop.f32.mrf.mxu0
    %387 = vmatprep.mubr.f32.mxu0 0.0
    %388 = vmatmul.mubr.f32.gmra.mxu0 %v132
    %v389 = vpop.f32.mrf.mxu0
    %v390 = vadd.f32 0.0, %v389
    %v391 = vpop.f32.mrf.mxu0
    %392 = vmatprep.mubr.f32.mxu0 0.0
    %393 = vmatmul.mubr.f32.gmra.mxu0 %v135
    %v394 = vpop.f32.mrf.mxu0
    %v395 = vadd.f32 0.0, %v394
    %v396 = vpop.f32.mrf.mxu0
    %397 = vmatprep.mubr.f32.mxu0 0.0
    %398 = vmatmul.mubr.f32.gmra.mxu0 %v138
    %v399 = vpop.f32.mrf.mxu0
    %v400 = vadd.f32 0.0, %v399
    %v401 = vpop.f32.mrf.mxu0
    %402 = vmatprep.mubr.f32.mxu0 0.0
    %403 = vmatmul.mubr.f32.gmra.mxu0 %v141
    %v404 = vpop.f32.mrf.mxu0
    %v405 = vadd.f32 0.0, %v404
    %v406 = vpop.f32.mrf.mxu0
    %407 = vmatprep.mubr.f32.mxu0 0.0
    %408 = vmatmul.mubr.f32.gmra.mxu0 %v144
    %v409 = vpop.f32.mrf.mxu0
    %v410 = vadd.f32 0.0, %v409
    %v411 = vpop.f32.mrf.mxu0
    %412 = vmatprep.mubr.f32.mxu0 0.0
    %413 = vmatmul.mubr.f32.gmra.mxu0 %v147
    %v414 = vpop.f32.mrf.mxu0
    %v415 = vadd.f32 0.0, %v414
    %v416 = vpop.f32.mrf.mxu0
    %417 = vmatprep.mubr.f32.mxu0 0.0
    %418 = vmatmul.mubr.f32.gmra.mxu0 %v150
    %v419 = vpop.f32.mrf.mxu0
    %v420 = vadd.f32 0.0, %v419
    %v421 = vpop.f32.mrf.mxu0
    %422 = vmatprep.mubr.f32.mxu0 0.0
    %423 = vmatmul.mubr.f32.gmra.mxu0 %v153
    %v424 = vpop.f32.mrf.mxu0
    %v425 = vadd.f32 0.0, %v424
    %v426 = vpop.f32.mrf.mxu0
    %427 = vmatprep.mubr.f32.mxu0 0.0
    %428 = vmatmul.mubr.f32.gmra.mxu0 %v156
    %v429 = vpop.f32.mrf.mxu0
    %v430 = vadd.f32 0.0, %v429
    %v431 = vpop.f32.mrf.mxu0
    %432 = vmatprep.mubr.f32.mxu0 0.0
    %433 = vmatmul.mubr.f32.gmra.mxu0 %v159
    %v434 = vpop.f32.mrf.mxu0
    %v435 = vadd.f32 0.0, %v434
    %v436 = vpop.f32.mrf.mxu0
    %437 = vmatprep.mubr.f32.mxu0 0.0
    %438 = vmatmul.mubr.f32.gmra.mxu0 %v162
    %v439 = vpop.f32.mrf.mxu0
    %v440 = vadd.f32 0.0, %v439
    %v441 = vpop.f32.mrf.mxu0
    %442 = vmatprep.mubr.f32.mxu0 0.0
    %443 = vmatmul.mubr.f32.gmra.mxu0 %v165
    %v444 = vpop.f32.mrf.mxu0
    %v445 = vadd.f32 0.0, %v444
    %v446 = vpop.f32.mrf.mxu0
    %447 = vmatprep.mubr.f32.mxu0 0.0
    %448 = vmatmul.mubr.f32.gmra.mxu0 %v168
    %v449 = vpop.f32.mrf.mxu0
    %v450 = vadd.f32 0.0, %v449
    %v451 = vpop.f32.mrf.mxu0
    %452 = vmatprep.mubr.f32.mxu0 0.0
    %453 = vmatmul.mubr.f32.gmra.mxu0 %v171
    %v454 = vpop.f32.mrf.mxu0
    %v455 = vadd.f32 0.0, %v454
    %v456 = vpop.f32.mrf.mxu0
    %457 = vmatprep.mubr.f32.mxu0 0.0
    %458 = vmatmul.mubr.f32.gmra.mxu0 %v174
    %v459 = vpop.f32.mrf.mxu0
    %v460 = vadd.f32 0.0, %v459
    %v461 = vpop.f32.mrf.mxu0
    %462 = vmatprep.mubr.f32.mxu0 0.0
    %463 = vmatmul.mubr.f32.gmra.mxu0 %v177
    %v464 = vpop.f32.mrf.mxu0
    %v465 = vadd.f32 0.0, %v464
    %v466 = vpop.f32.mrf.mxu0
    %467 = vmatprep.mubr.f32.mxu0 0.0
    %468 = vmatmul.mubr.f32.gmra.mxu0 %v180
    %v469 = vpop.f32.mrf.mxu0
    %v470 = vadd.f32 0.0, %v469
    %v471 = vpop.f32.mrf.mxu0
    %472 = vmatprep.mubr.f32.mxu0 0.0
    %473 = vmatmul.mubr.f32.gmra.mxu0 %v183
    %v474 = vpop.f32.mrf.mxu0
    %v475 = vadd.f32 0.0, %v474
    %v476 = vpop.f32.mrf.mxu0
    %477 = vmatprep.mubr.f32.mxu0 0.0
    %478 = vmatmul.mubr.f32.gmra.mxu0 %v186
    %v479 = vpop.f32.mrf.mxu0
    %v480 = vadd.f32 0.0, %v479
    %v481 = vpop.f32.mrf.mxu0
    %482 = vmatprep.mubr.f32.mxu0 0.0
    %483 = vmatmul.mubr.f32.gmra.mxu0 %v189
    %v484 = vpop.f32.mrf.mxu0
    %v485 = vadd.f32 0.0, %v484
    %v486 = vpop.f32.mrf.mxu0
    %487 = vmatprep.mubr.f32.mxu0 0.0
    %488 = vmatmul.mubr.f32.gmra.mxu0 %v192
    %v489 = vpop.f32.mrf.mxu0
    %v490 = vadd.f32 0.0, %v489
    %v491 = vpop.f32.mrf.mxu0
    %492 = vmatprep.mubr.f32.mxu0 0.0
    %493 = vmatmul.mubr.f32.gmra.mxu0 %v195
    %v494 = vpop.f32.mrf.mxu0
    %v495 = vadd.f32 0.0, %v494
    %v496 = vpop.f32.mrf.mxu0
    %497 = vmatprep.mubr.f32.mxu0 0.0
    %498 = vmatmul.mubr.f32.gmra.mxu0 %v198
    %v499 = vpop.f32.mrf.mxu0
    %v500 = vadd.f32 0.0, %v499
    %v501 = vpop.f32.mrf.mxu0
    %502 = vmatprep.mubr.f32.mxu0 0.0
    %503 = vmatmul.mubr.f32.gmra.mxu0 %v201
    %v504 = vpop.f32.mrf.mxu0
    %v505 = vadd.f32 0.0, %v504
    %v506 = vpop.f32.mrf.mxu0
    %507 = vmatprep.mubr.f32.mxu0 0.0
    %508 = vmatmul.mubr.f32.gmra.mxu0 %v204
    %v509 = vpop.f32.mrf.mxu0
    %v510 = vadd.f32 0.0, %v509
    %v511 = vpop.f32.mrf.mxu0
    %512 = vmatprep.mubr.f32.mxu0 0.0
    %513 = vmatmul.mubr.f32.gmra.mxu0 %v207
    %v514 = vpop.f32.mrf.mxu0
    %v515 = vadd.f32 0.0, %v514
    %v516 = vpop.f32.mrf.mxu0
    %517 = vdwg.mxu0
    %566 = vrot.lane.b32.xlu0 %v280, 64
    %v567 = vpop.permute.xlu0 %566
    %568 = vrot.lane.b32.xlu0 %v285, 64
    %v569 = vpop.permute.xlu0 %568
    %570 = vrot.lane.b32.xlu0 %v290, 64
    %v571 = vpop.permute.xlu0 %570
    %572 = vrot.lane.b32.xlu0 %v295, 64
    %v573 = vpop.permute.xlu0 %572
    %574 = vrot.lane.b32.xlu0 %v300, 64
    %v575 = vpop.permute.xlu0 %574
    %576 = vrot.lane.b32.xlu0 %v305, 64
    %v577 = vpop.permute.xlu0 %576
    %578 = vrot.lane.b32.xlu0 %v310, 64
    %v579 = vpop.permute.xlu0 %578
    %580 = vrot.lane.b32.xlu0 %v315, 64
    %v581 = vpop.permute.xlu0 %580
    %582 = vrot.lane.b32.xlu0 %v320, 64
    %v583 = vpop.permute.xlu0 %582
    %584 = vrot.lane.b32.xlu0 %v325, 64
    %v585 = vpop.permute.xlu0 %584
    %586 = vrot.lane.b32.xlu0 %v330, 64
    %v587 = vpop.permute.xlu0 %586
    %588 = vrot.lane.b32.xlu0 %v335, 64
    %v589 = vpop.permute.xlu0 %588
    %590 = vrot.lane.b32.xlu0 %v340, 64
    %v591 = vpop.permute.xlu0 %590
    %592 = vrot.lane.b32.xlu0 %v345, 64
    %v593 = vpop.permute.xlu0 %592
    %594 = vrot.lane.b32.xlu0 %v350, 64
    %v595 = vpop.permute.xlu0 %594
    %596 = vrot.lane.b32.xlu0 %v355, 64
    %v597 = vpop.permute.xlu0 %596
    %598 = vrot.lane.b32.xlu0 %v360, 64
    %v599 = vpop.permute.xlu0 %598
    %600 = vrot.lane.b32.xlu0 %v365, 64
    %v601 = vpop.permute.xlu0 %600
    %602 = vrot.lane.b32.xlu0 %v370, 64
    %v603 = vpop.permute.xlu0 %602
    %604 = vrot.lane.b32.xlu0 %v375, 64
    %v605 = vpop.permute.xlu0 %604
    %606 = vrot.lane.b32.xlu0 %v380, 64
    %v607 = vpop.permute.xlu0 %606
    %608 = vrot.lane.b32.xlu0 %v385, 64
    %v609 = vpop.permute.xlu0 %608
    %610 = vrot.lane.b32.xlu0 %v390, 64
    %v611 = vpop.permute.xlu0 %610
    %612 = vrot.lane.b32.xlu0 %v395, 64
    %v613 = vpop.permute.xlu0 %612
    %614 = vrot.lane.b32.xlu0 %v400, 64
    %v615 = vpop.permute.xlu0 %614
    %616 = vrot.lane.b32.xlu0 %v405, 64
    %v617 = vpop.permute.xlu0 %616
    %618 = vrot.lane.b32.xlu0 %v410, 64
    %v619 = vpop.permute.xlu0 %618
    %620 = vrot.lane.b32.xlu0 %v415, 64
    %v621 = vpop.permute.xlu0 %620
    %622 = vrot.lane.b32.xlu0 %v420, 64
    %v623 = vpop.permute.xlu0 %622
    %624 = vrot.lane.b32.xlu0 %v425, 64
    %v625 = vpop.permute.xlu0 %624
    %626 = vrot.lane.b32.xlu0 %v430, 64
    %v627 = vpop.permute.xlu0 %626
    %628 = vrot.lane.b32.xlu0 %v435, 64
    %v629 = vpop.permute.xlu0 %628
    %630 = vrot.lane.b32.xlu0 %v440, 64
    %v631 = vpop.permute.xlu0 %630
    %632 = vrot.lane.b32.xlu0 %v445, 64
    %v633 = vpop.permute.xlu0 %632
    %634 = vrot.lane.b32.xlu0 %v450, 64
    %v635 = vpop.permute.xlu0 %634
    %636 = vrot.lane.b32.xlu0 %v455, 64
    %v637 = vpop.permute.xlu0 %636
    %638 = vrot.lane.b32.xlu0 %v460, 64
    %v639 = vpop.permute.xlu0 %638
    %640 = vrot.lane.b32.xlu0 %v465, 64
    %v641 = vpop.permute.xlu0 %640
    %642 = vrot.lane.b32.xlu0 %v470, 64
    %v643 = vpop.permute.xlu0 %642
    %644 = vrot.lane.b32.xlu0 %v475, 64
    %v645 = vpop.permute.xlu0 %644
    %646 = vrot.lane.b32.xlu0 %v480, 64
    %v647 = vpop.permute.xlu0 %646
    %648 = vrot.lane.b32.xlu0 %v485, 64
    %v649 = vpop.permute.xlu0 %648
    %650 = vrot.lane.b32.xlu0 %v490, 64
    %v651 = vpop.permute.xlu0 %650
    %652 = vrot.lane.b32.xlu0 %v495, 64
    %v653 = vpop.permute.xlu0 %652
    %654 = vrot.lane.b32.xlu0 %v500, 64
    %v655 = vpop.permute.xlu0 %654
    %656 = vrot.lane.b32.xlu0 %v505, 64
    %v657 = vpop.permute.xlu0 %656
    %658 = vrot.lane.b32.xlu0 %v510, 64
    %v659 = vpop.permute.xlu0 %658
    %660 = vrot.lane.b32.xlu0 %v515, 64
    %v661 = vpop.permute.xlu0 %660
    %v710 = vmul.f32 %v280, %v567
    %v711 = vmul.f32 %v285, %v569
    %v712 = vmul.f32 %v290, %v571
    %v713 = vmul.f32 %v295, %v573
    %v714 = vmul.f32 %v300, %v575
    %v715 = vmul.f32 %v305, %v577
    %v716 = vmul.f32 %v310, %v579
    %v717 = vmul.f32 %v315, %v581
    %v718 = vmul.f32 %v320, %v583
    %v719 = vmul.f32 %v325, %v585
    %v720 = vmul.f32 %v330, %v587
    %v721 = vmul.f32 %v335, %v589
    %v722 = vmul.f32 %v340, %v591
    %v723 = vmul.f32 %v345, %v593
    %v724 = vmul.f32 %v350, %v595
    %v725 = vmul.f32 %v355, %v597
    %v726 = vmul.f32 %v360, %v599
    %v727 = vmul.f32 %v365, %v601
    %v728 = vmul.f32 %v370, %v603
    %v729 = vmul.f32 %v375, %v605
    %v730 = vmul.f32 %v380, %v607
    %v731 = vmul.f32 %v385, %v609
    %v732 = vmul.f32 %v390, %v611
    %v733 = vmul.f32 %v395, %v613
    %v734 = vmul.f32 %v400, %v615
    %v735 = vmul.f32 %v405, %v617
    %v736 = vmul.f32 %v410, %v619
    %v737 = vmul.f32 %v415, %v621
    %v738 = vmul.f32 %v420, %v623
    %v739 = vmul.f32 %v425, %v625
    %v740 = vmul.f32 %v430, %v627
    %v741 = vmul.f32 %v435, %v629
    %v742 = vmul.f32 %v440, %v631
    %v743 = vmul.f32 %v445, %v633
    %v744 = vmul.f32 %v450, %v635
    %v745 = vmul.f32 %v455, %v637
    %v746 = vmul.f32 %v460, %v639
    %v747 = vmul.f32 %v465, %v641
    %v748 = vmul.f32 %v470, %v643
    %v749 = vmul.f32 %v475, %v645
    %v750 = vmul.f32 %v480, %v647
    %v751 = vmul.f32 %v485, %v649
    %v752 = vmul.f32 %v490, %v651
    %v753 = vmul.f32 %v495, %v653
    %v754 = vmul.f32 %v500, %v655
    %v755 = vmul.f32 %v505, %v657
    %v756 = vmul.f32 %v510, %v659
    %v757 = vmul.f32 %v515, %v661
    %vm758 = vcmask 523264
    %v759 = vsel %vm758, %v710, 0.0
    %v760 = vsel %vm758, %v726, 0.0
    %v761 = vadd.f32 %v759, %v760
    %v762 = vsel %vm758, %v742, 0.0
    %v763 = vadd.f32 %v761, %v762
    %v764 = vsel %vm758, %v711, 0.0
    %v765 = vsel %vm758, %v727, 0.0
    %v766 = vadd.f32 %v764, %v765
    %v767 = vsel %vm758, %v743, 0.0
    %v768 = vadd.f32 %v766, %v767
    %v769 = vsel %vm758, %v712, 0.0
    %v770 = vsel %vm758, %v728, 0.0
    %v771 = vadd.f32 %v769, %v770
    %v772 = vsel %vm758, %v744, 0.0
    %v773 = vadd.f32 %v771, %v772
    %v774 = vsel %vm758, %v713, 0.0
    %v775 = vsel %vm758, %v729, 0.0
    %v776 = vadd.f32 %v774, %v775
    %v777 = vsel %vm758, %v745, 0.0
    %v778 = vadd.f32 %v776, %v777
    %v779 = vsel %vm758, %v714, 0.0
    %v780 = vsel %vm758, %v730, 0.0
    %v781 = vadd.f32 %v779, %v780
    %v782 = vsel %vm758, %v746, 0.0
    %v783 = vadd.f32 %v781, %v782
    %v784 = vsel %vm758, %v715, 0.0
    %v785 = vsel %vm758, %v731, 0.0
    %v786 = vadd.f32 %v784, %v785
    %v787 = vsel %vm758, %v747, 0.0
    %v788 = vadd.f32 %v786, %v787
    %v789 = vsel %vm758, %v716, 0.0
    %v790 = vsel %vm758, %v732, 0.0
    %v791 = vadd.f32 %v789, %v790
    %v792 = vsel %vm758, %v748, 0.0
    %v793 = vadd.f32 %v791, %v792
    %v794 = vsel %vm758, %v717, 0.0
    %v795 = vsel %vm758, %v733, 0.0
    %v796 = vadd.f32 %v794, %v795
    %v797 = vsel %vm758, %v749, 0.0
    %v798 = vadd.f32 %v796, %v797
    %v799 = vsel %vm758, %v718, 0.0
    %v800 = vsel %vm758, %v734, 0.0
    %v801 = vadd.f32 %v799, %v800
    %v802 = vsel %vm758, %v750, 0.0
    %v803 = vadd.f32 %v801, %v802
    %v804 = vsel %vm758, %v719, 0.0
    %v805 = vsel %vm758, %v735, 0.0
    %v806 = vadd.f32 %v804, %v805
    %v807 = vsel %vm758, %v751, 0.0
    %v808 = vadd.f32 %v806, %v807
    %v809 = vsel %vm758, %v720, 0.0
    %v810 = vsel %vm758, %v736, 0.0
    %v811 = vadd.f32 %v809, %v810
    %v812 = vsel %vm758, %v752, 0.0
    %v813 = vadd.f32 %v811, %v812
    %v814 = vsel %vm758, %v721, 0.0
    %v815 = vsel %vm758, %v737, 0.0
    %v816 = vadd.f32 %v814, %v815
    %v817 = vsel %vm758, %v753, 0.0
    %v818 = vadd.f32 %v816, %v817
    %v819 = vsel %vm758, %v722, 0.0
    %v820 = vsel %vm758, %v738, 0.0
    %v821 = vadd.f32 %v819, %v820
    %v822 = vsel %vm758, %v754, 0.0
    %v823 = vadd.f32 %v821, %v822
    %v824 = vsel %vm758, %v723, 0.0
    %v825 = vsel %vm758, %v739, 0.0
    %v826 = vadd.f32 %v824, %v825
    %v827 = vsel %vm758, %v755, 0.0
    %v828 = vadd.f32 %v826, %v827
    %v829 = vsel %vm758, %v724, 0.0
    %v830 = vsel %vm758, %v740, 0.0
    %v831 = vadd.f32 %v829, %v830
    %v832 = vsel %vm758, %v756, 0.0
    %v833 = vadd.f32 %v831, %v832
    %v834 = vsel %vm758, %v725, 0.0
    %v835 = vsel %vm758, %v741, 0.0
    %v836 = vadd.f32 %v834, %v835
    %v837 = vsel %vm758, %v757, 0.0
    %v838 = vadd.f32 %v836, %v837
    %v839 = vmul.f32 %v280, %v280
    %v840 = vmul.f32 %v285, %v285
    %v841 = vmul.f32 %v290, %v290
    %v842 = vmul.f32 %v295, %v295
    %v843 = vmul.f32 %v300, %v300
    %v844 = vmul.f32 %v305, %v305
    %v845 = vmul.f32 %v310, %v310
    %v846 = vmul.f32 %v315, %v315
    %v847 = vmul.f32 %v320, %v320
    %v848 = vmul.f32 %v325, %v325
    %v849 = vmul.f32 %v330, %v330
    %v850 = vmul.f32 %v335, %v335
    %v851 = vmul.f32 %v340, %v340
    %v852 = vmul.f32 %v345, %v345
    %v853 = vmul.f32 %v350, %v350
    %v854 = vmul.f32 %v355, %v355
    %v855 = vmul.f32 %v360, %v360
    %v856 = vmul.f32 %v365, %v365
    %v857 = vmul.f32 %v370, %v370
    %v858 = vmul.f32 %v375, %v375
    %v859 = vmul.f32 %v380, %v380
    %v860 = vmul.f32 %v385, %v385
    %v861 = vmul.f32 %v390, %v390
    %v862 = vmul.f32 %v395, %v395
    %v863 = vmul.f32 %v400, %v400
    %v864 = vmul.f32 %v405, %v405
    %v865 = vmul.f32 %v410, %v410
    %v866 = vmul.f32 %v415, %v415
    %v867 = vmul.f32 %v420, %v420
    %v868 = vmul.f32 %v425, %v425
    %v869 = vmul.f32 %v430, %v430
    %v870 = vmul.f32 %v435, %v435
    %v871 = vmul.f32 %v440, %v440
    %v872 = vmul.f32 %v445, %v445
    %v873 = vmul.f32 %v450, %v450
    %v874 = vmul.f32 %v455, %v455
    %v875 = vmul.f32 %v460, %v460
    %v876 = vmul.f32 %v465, %v465
    %v877 = vmul.f32 %v470, %v470
    %v878 = vmul.f32 %v475, %v475
    %v879 = vmul.f32 %v480, %v480
    %v880 = vmul.f32 %v485, %v485
    %v881 = vmul.f32 %v490, %v490
    %v882 = vmul.f32 %v495, %v495
    %v883 = vmul.f32 %v500, %v500
    %v884 = vmul.f32 %v505, %v505
    %v885 = vmul.f32 %v510, %v510
    %v886 = vmul.f32 %v515, %v515
    %vm887 = vcmask 1048064
    %v888 = vsel %vm887, %v839, 0.0
    %v889 = vsel %vm887, %v855, 0.0
    %v890 = vadd.f32 %v888, %v889
    %v891 = vsel %vm887, %v871, 0.0
    %v892 = vadd.f32 %v890, %v891
    %v893 = vsel %vm887, %v840, 0.0
    %v894 = vsel %vm887, %v856, 0.0
    %v895 = vadd.f32 %v893, %v894
    %v896 = vsel %vm887, %v872, 0.0
    %v897 = vadd.f32 %v895, %v896
    %v898 = vsel %vm887, %v841, 0.0
    %v899 = vsel %vm887, %v857, 0.0
    %v900 = vadd.f32 %v898, %v899
    %v901 = vsel %vm887, %v873, 0.0
    %v902 = vadd.f32 %v900, %v901
    %v903 = vsel %vm887, %v842, 0.0
    %v904 = vsel %vm887, %v858, 0.0
    %v905 = vadd.f32 %v903, %v904
    %v906 = vsel %vm887, %v874, 0.0
    %v907 = vadd.f32 %v905, %v906
    %v908 = vsel %vm887, %v843, 0.0
    %v909 = vsel %vm887, %v859, 0.0
    %v910 = vadd.f32 %v908, %v909
    %v911 = vsel %vm887, %v875, 0.0
    %v912 = vadd.f32 %v910, %v911
    %v913 = vsel %vm887, %v844, 0.0
    %v914 = vsel %vm887, %v860, 0.0
    %v915 = vadd.f32 %v913, %v914
    %v916 = vsel %vm887, %v876, 0.0
    %v917 = vadd.f32 %v915, %v916
    %v918 = vsel %vm887, %v845, 0.0
    %v919 = vsel %vm887, %v861, 0.0
    %v920 = vadd.f32 %v918, %v919
    %v921 = vsel %vm887, %v877, 0.0
    %v922 = vadd.f32 %v920, %v921
    %v923 = vsel %vm887, %v846, 0.0
    %v924 = vsel %vm887, %v862, 0.0
    %v925 = vadd.f32 %v923, %v924
    %v926 = vsel %vm887, %v878, 0.0
    %v927 = vadd.f32 %v925, %v926
    %v928 = vsel %vm887, %v847, 0.0
    %v929 = vsel %vm887, %v863, 0.0
    %v930 = vadd.f32 %v928, %v929
    %v931 = vsel %vm887, %v879, 0.0
    %v932 = vadd.f32 %v930, %v931
    %v933 = vsel %vm887, %v848, 0.0
    %v934 = vsel %vm887, %v864, 0.0
    %v935 = vadd.f32 %v933, %v934
    %v936 = vsel %vm887, %v880, 0.0
    %v937 = vadd.f32 %v935, %v936
    %v938 = vsel %vm887, %v849, 0.0
    %v939 = vsel %vm887, %v865, 0.0
    %v940 = vadd.f32 %v938, %v939
    %v941 = vsel %vm887, %v881, 0.0
    %v942 = vadd.f32 %v940, %v941
    %v943 = vsel %vm887, %v850, 0.0
    %v944 = vsel %vm887, %v866, 0.0
    %v945 = vadd.f32 %v943, %v944
    %v946 = vsel %vm887, %v882, 0.0
    %v947 = vadd.f32 %v945, %v946
    %v948 = vsel %vm887, %v851, 0.0
    %v949 = vsel %vm887, %v867, 0.0
    %v950 = vadd.f32 %v948, %v949
    %v951 = vsel %vm887, %v883, 0.0
    %v952 = vadd.f32 %v950, %v951
    %v953 = vsel %vm887, %v852, 0.0
    %v954 = vsel %vm887, %v868, 0.0
    %v955 = vadd.f32 %v953, %v954
    %v956 = vsel %vm887, %v884, 0.0
    %v957 = vadd.f32 %v955, %v956
    %v958 = vsel %vm887, %v853, 0.0
    %v959 = vsel %vm887, %v869, 0.0
    %v960 = vadd.f32 %v958, %v959
    %v961 = vsel %vm887, %v885, 0.0
    %v962 = vadd.f32 %v960, %v961
    %v963 = vsel %vm887, %v854, 0.0
    %v964 = vsel %vm887, %v870, 0.0
    %v965 = vadd.f32 %v963, %v964
    %v966 = vsel %vm887, %v886, 0.0
    %v967 = vadd.f32 %v965, %v966
    %vm968 = vcmp.lt.f32.partialorder %v763, 0.0
    %vm969 = vcmp.lt.f32.partialorder %v768, 0.0
    %vm970 = vcmp.lt.f32.partialorder %v773, 0.0
    %vm971 = vcmp.lt.f32.partialorder %v778, 0.0
    %vm972 = vcmp.lt.f32.partialorder %v783, 0.0
    %vm973 = vcmp.lt.f32.partialorder %v788, 0.0
    %vm974 = vcmp.lt.f32.partialorder %v793, 0.0
    %vm975 = vcmp.lt.f32.partialorder %v798, 0.0
    %vm976 = vcmp.lt.f32.partialorder %v803, 0.0
    %vm977 = vcmp.lt.f32.partialorder %v808, 0.0
    %vm978 = vcmp.lt.f32.partialorder %v813, 0.0
    %vm979 = vcmp.lt.f32.partialorder %v818, 0.0
    %vm980 = vcmp.lt.f32.partialorder %v823, 0.0
    %vm981 = vcmp.lt.f32.partialorder %v828, 0.0
    %vm982 = vcmp.lt.f32.partialorder %v833, 0.0
    %vm983 = vcmp.lt.f32.partialorder %v838, 0.0
    %v984 = vsel %vm968, 1, 0
    %v985 = vsel %vm969, 1, 0
    %v986 = vsel %vm970, 1, 0
    %v987 = vsel %vm971, 1, 0
    %v988 = vsel %vm972, 1, 0
    %v989 = vsel %vm973, 1, 0
    %v990 = vsel %vm974, 1, 0
    %v991 = vsel %vm975, 1, 0
    %v992 = vsel %vm976, 1, 0
    %v993 = vsel %vm977, 1, 0
    %v994 = vsel %vm978, 1, 0
    %v995 = vsel %vm979, 1, 0
    %v996 = vsel %vm980, 1, 0
    %v997 = vsel %vm981, 1, 0
    %v998 = vsel %vm982, 1, 0
    %v999 = vsel %vm983, 1, 0
    %v1000 = vcvt.s32.f32 %v984
    %v1001 = vcvt.s32.f32 %v985
    %v1002 = vcvt.s32.f32 %v986
    %v1003 = vcvt.s32.f32 %v987
    %v1004 = vcvt.s32.f32 %v988
    %v1005 = vcvt.s32.f32 %v989
    %v1006 = vcvt.s32.f32 %v990
    %v1007 = vcvt.s32.f32 %v991
    %v1008 = vcvt.s32.f32 %v992
    %v1009 = vcvt.s32.f32 %v993
    %v1010 = vcvt.s32.f32 %v994
    %v1011 = vcvt.s32.f32 %v995
    %v1012 = vcvt.s32.f32 %v996
    %v1013 = vcvt.s32.f32 %v997
    %v1014 = vcvt.s32.f32 %v998
    %v1015 = vcvt.s32.f32 %v999
    %v1016 = vadd.f32 %v892, 1e-06
    %v1017 = vadd.f32 %v897, 1e-06
    %v1018 = vadd.f32 %v902, 1e-06
    %v1019 = vadd.f32 %v907, 1e-06
    %v1020 = vadd.f32 %v912, 1e-06
    %v1021 = vadd.f32 %v917, 1e-06
    %v1022 = vadd.f32 %v922, 1e-06
    %v1023 = vadd.f32 %v927, 1e-06
    %v1024 = vadd.f32 %v932, 1e-06
    %v1025 = vadd.f32 %v937, 1e-06
    %v1026 = vadd.f32 %v942, 1e-06
    %v1027 = vadd.f32 %v947, 1e-06
    %v1028 = vadd.f32 %v952, 1e-06
    %v1029 = vadd.f32 %v957, 1e-06
    %v1030 = vadd.f32 %v962, 1e-06
    %v1031 = vadd.f32 %v967, 1e-06
    %v1032 = vrcp.pop %v1016
    %v1033 = vrcp.pop %v1017
    %v1034 = vrcp.pop %v1018
    %v1035 = vrcp.pop %v1019
    %v1036 = vrcp.pop %v1020
    %v1037 = vrcp.pop %v1021
    %v1038 = vrcp.pop %v1022
    %v1039 = vrcp.pop %v1023
    %v1040 = vrcp.pop %v1024
    %v1041 = vrcp.pop %v1025
    %v1042 = vrcp.pop %v1026
    %v1043 = vrcp.pop %v1027
    %v1044 = vrcp.pop %v1028
    %v1045 = vrcp.pop %v1029
    %v1046 = vrcp.pop %v1030
    %v1047 = vrcp.pop %v1031
    %1064 = vrot.lane.b32.xlu0 %v1032, 64
    %v1065 = vpop.permute.xlu0 %1064
    %1066 = vrot.lane.b32.xlu0 %v1033, 64
    %v1067 = vpop.permute.xlu0 %1066
    %1068 = vrot.lane.b32.xlu0 %v1034, 64
    %v1069 = vpop.permute.xlu0 %1068
    %1070 = vrot.lane.b32.xlu0 %v1035, 64
    %v1071 = vpop.permute.xlu0 %1070
    %1072 = vrot.lane.b32.xlu0 %v1036, 64
    %v1073 = vpop.permute.xlu0 %1072
    %1074 = vrot.lane.b32.xlu0 %v1037, 64
    %v1075 = vpop.permute.xlu0 %1074
    %1076 = vrot.lane.b32.xlu0 %v1038, 64
    %v1077 = vpop.permute.xlu0 %1076
    %1078 = vrot.lane.b32.xlu0 %v1039, 64
    %v1079 = vpop.permute.xlu0 %1078
    %1080 = vrot.lane.b32.xlu0 %v1040, 64
    %v1081 = vpop.permute.xlu0 %1080
    %1082 = vrot.lane.b32.xlu0 %v1041, 64
    %v1083 = vpop.permute.xlu0 %1082
    %1084 = vrot.lane.b32.xlu0 %v1042, 64
    %v1085 = vpop.permute.xlu0 %1084
    %1086 = vrot.lane.b32.xlu0 %v1043, 64
    %v1087 = vpop.permute.xlu0 %1086
    %1088 = vrot.lane.b32.xlu0 %v1044, 64
    %v1089 = vpop.permute.xlu0 %1088
    %1090 = vrot.lane.b32.xlu0 %v1045, 64
    %v1091 = vpop.permute.xlu0 %1090
    %1092 = vrot.lane.b32.xlu0 %v1046, 64
    %v1093 = vpop.permute.xlu0 %1092
    %1094 = vrot.lane.b32.xlu0 %v1047, 64
    %v1095 = vpop.permute.xlu0 %1094
    %v1112 = vmul.f32 %v763, %v1065
    %v1113 = vmul.f32 %v768, %v1067
    %v1114 = vmul.f32 %v773, %v1069
    %v1115 = vmul.f32 %v778, %v1071
    %v1116 = vmul.f32 %v783, %v1073
    %v1117 = vmul.f32 %v788, %v1075
    %v1118 = vmul.f32 %v793, %v1077
    %v1119 = vmul.f32 %v798, %v1079
    %v1120 = vmul.f32 %v803, %v1081
    %v1121 = vmul.f32 %v808, %v1083
    %v1122 = vmul.f32 %v813, %v1085
    %v1123 = vmul.f32 %v818, %v1087
    %v1124 = vmul.f32 %v823, %v1089
    %v1125 = vmul.f32 %v828, %v1091
    %v1126 = vmul.f32 %v833, %v1093
    %v1127 = vmul.f32 %v838, %v1095
    %v1128 = vmul.f32 %v1000, %v1112
    %v1129 = vmul.f32 %v1001, %v1113
    %v1130 = vmul.f32 %v1002, %v1114
    %v1131 = vmul.f32 %v1003, %v1115
    %v1132 = vmul.f32 %v1004, %v1116
    %v1133 = vmul.f32 %v1005, %v1117
    %v1134 = vmul.f32 %v1006, %v1118
    %v1135 = vmul.f32 %v1007, %v1119
    %v1136 = vmul.f32 %v1008, %v1120
    %v1137 = vmul.f32 %v1009, %v1121
    %v1138 = vmul.f32 %v1010, %v1122
    %v1139 = vmul.f32 %v1011, %v1123
    %v1140 = vmul.f32 %v1012, %v1124
    %v1141 = vmul.f32 %v1013, %v1125
    %v1142 = vmul.f32 %v1014, %v1126
    %v1143 = vmul.f32 %v1015, %v1127
    %v1144 = vmul.f32 %v1128, %v567
    %v1145 = vmul.f32 %v1129, %v569
    %v1146 = vmul.f32 %v1130, %v571
    %v1147 = vmul.f32 %v1131, %v573
    %v1148 = vmul.f32 %v1132, %v575
    %v1149 = vmul.f32 %v1133, %v577
    %v1150 = vmul.f32 %v1134, %v579
    %v1151 = vmul.f32 %v1135, %v581
    %v1152 = vmul.f32 %v1136, %v583
    %v1153 = vmul.f32 %v1137, %v585
    %v1154 = vmul.f32 %v1138, %v587
    %v1155 = vmul.f32 %v1139, %v589
    %v1156 = vmul.f32 %v1140, %v591
    %v1157 = vmul.f32 %v1141, %v593
    %v1158 = vmul.f32 %v1142, %v595
    %v1159 = vmul.f32 %v1143, %v597
    %v1160 = vmul.f32 %v1128, %v599
    %v1161 = vmul.f32 %v1129, %v601
    %v1162 = vmul.f32 %v1130, %v603
    %v1163 = vmul.f32 %v1131, %v605
    %v1164 = vmul.f32 %v1132, %v607
    %v1165 = vmul.f32 %v1133, %v609
    %v1166 = vmul.f32 %v1134, %v611
    %v1167 = vmul.f32 %v1135, %v613
    %v1168 = vmul.f32 %v1136, %v615
    %v1169 = vmul.f32 %v1137, %v617
    %v1170 = vmul.f32 %v1138, %v619
    %v1171 = vmul.f32 %v1139, %v621
    %v1172 = vmul.f32 %v1140, %v623
    %v1173 = vmul.f32 %v1141, %v625
    %v1174 = vmul.f32 %v1142, %v627
    %v1175 = vmul.f32 %v1143, %v629
    %v1176 = vmul.f32 %v1128, %v631
    %v1177 = vmul.f32 %v1129, %v633
    %v1178 = vmul.f32 %v1130, %v635
    %v1179 = vmul.f32 %v1131, %v637
    %v1180 = vmul.f32 %v1132, %v639
    %v1181 = vmul.f32 %v1133, %v641
    %v1182 = vmul.f32 %v1134, %v643
    %v1183 = vmul.f32 %v1135, %v645
    %v1184 = vmul.f32 %v1136, %v647
    %v1185 = vmul.f32 %v1137, %v649
    %v1186 = vmul.f32 %v1138, %v651
    %v1187 = vmul.f32 %v1139, %v653
    %v1188 = vmul.f32 %v1140, %v655
    %v1189 = vmul.f32 %v1141, %v657
    %v1190 = vmul.f32 %v1142, %v659
    %v1191 = vmul.f32 %v1143, %v661
    %v1192 = vsub.f32 %v280, %v1144
    %v1193 = vsub.f32 %v285, %v1145
    %v1194 = vsub.f32 %v290, %v1146
    %v1195 = vsub.f32 %v295, %v1147
    %v1196 = vsub.f32 %v300, %v1148
    %v1197 = vsub.f32 %v305, %v1149
    %v1198 = vsub.f32 %v310, %v1150
    %v1199 = vsub.f32 %v315, %v1151
    %v1200 = vsub.f32 %v320, %v1152
    %v1201 = vsub.f32 %v325, %v1153
    %v1202 = vsub.f32 %v330, %v1154
    %v1203 = vsub.f32 %v335, %v1155
    %v1204 = vsub.f32 %v340, %v1156
    %v1205 = vsub.f32 %v345, %v1157
    %v1206 = vsub.f32 %v350, %v1158
    %v1207 = vsub.f32 %v355, %v1159
    %v1208 = vsub.f32 %v360, %v1160
    %v1209 = vsub.f32 %v365, %v1161
    %v1210 = vsub.f32 %v370, %v1162
    %v1211 = vsub.f32 %v375, %v1163
    %v1212 = vsub.f32 %v380, %v1164
    %v1213 = vsub.f32 %v385, %v1165
    %v1214 = vsub.f32 %v390, %v1166
    %v1215 = vsub.f32 %v395, %v1167
    %v1216 = vsub.f32 %v400, %v1168
    %v1217 = vsub.f32 %v405, %v1169
    %v1218 = vsub.f32 %v410, %v1170
    %v1219 = vsub.f32 %v415, %v1171
    %v1220 = vsub.f32 %v420, %v1172
    %v1221 = vsub.f32 %v425, %v1173
    %v1222 = vsub.f32 %v430, %v1174
    %v1223 = vsub.f32 %v435, %v1175
    %v1224 = vsub.f32 %v440, %v1176
    %v1225 = vsub.f32 %v445, %v1177
    %v1226 = vsub.f32 %v450, %v1178
    %v1227 = vsub.f32 %v455, %v1179
    %v1228 = vsub.f32 %v460, %v1180
    %v1229 = vsub.f32 %v465, %v1181
    %v1230 = vsub.f32 %v470, %v1182
    %v1231 = vsub.f32 %v475, %v1183
    %v1232 = vsub.f32 %v480, %v1184
    %v1233 = vsub.f32 %v485, %v1185
    %v1234 = vsub.f32 %v490, %v1186
    %v1235 = vsub.f32 %v495, %v1187
    %v1236 = vsub.f32 %v500, %v1188
    %v1237 = vsub.f32 %v505, %v1189
    %v1238 = vsub.f32 %v510, %v1190
    %v1239 = vsub.f32 %v515, %v1191
    %v1240 = vld [vmem:[%s2] sm:$0xff]
    %v1241 = vld [vmem:[%s2 + $0x8] sm:$0xff]
    %v1242 = vld [vmem:[%s2 + $0x10] sm:$0xff]
    %v1243 = vld [vmem:[%s2 + $0x18] sm:$0xff]
    %1244 = vmatprep.subr.mxu0 0.0
    %1245 = vmatpush1.msra.mxu0 %v1207
    %1246 = vmatprep.subr.mxu0 0.0
    %1247 = vmatpush1.msra.mxu0 %v1206
    %1248 = vmatprep.subr.mxu0 0.0
    %1249 = vmatpush1.msra.mxu0 %v1205
    %1250 = vmatprep.subr.mxu0 0.0
    %1251 = vmatpush1.msra.mxu0 %v1204
    %1252 = vmatprep.subr.mxu0 0.0
    %1253 = vmatpush1.msra.mxu0 %v1203
    %1254 = vmatprep.subr.mxu0 0.0
    %1255 = vmatpush1.msra.mxu0 %v1202
    %1256 = vmatprep.subr.mxu0 0.0
    %1257 = vmatpush1.msra.mxu0 %v1201
    %1258 = vmatprep.subr.mxu0 0.0
    %1259 = vmatpush1.msra.mxu0 %v1200
    %1260 = vmatprep.subr.mxu0 0.0
    %1261 = vmatpush1.msra.mxu0 %v1199
    %1262 = vmatprep.subr.mxu0 0.0
    %1263 = vmatpush1.msra.mxu0 %v1198
    %1264 = vmatprep.subr.mxu0 0.0
    %1265 = vmatpush1.msra.mxu0 %v1197
    %1266 = vmatprep.subr.mxu0 0.0
    %1267 = vmatpush1.msra.mxu0 %v1196
    %1268 = vmatprep.subr.mxu0 0.0
    %1269 = vmatpush1.msra.mxu0 %v1195
    %1270 = vmatprep.subr.mxu0 0.0
    %1271 = vmatpush1.msra.mxu0 %v1194
    %1272 = vmatprep.subr.mxu0 0.0
    %1273 = vmatpush1.msra.mxu0 %v1193
    %1274 = vmatprep.subr.mxu0 0.0
    %1275 = vmatpush1.msra.mxu0 %v1192
    %1276 = vmatprep.subr.mxu0 0.0
    %1277 = vmatpush2.msra.mxu0 0.0
    %1278 = vmatprep.subr.mxu0 0.0
    %1279 = vmatpush2.msra.mxu0 0.0
    %1280 = vmatprep.subr.mxu0 0.0
    %1281 = vmatpush2.msra.mxu0 0.0
    %1282 = vmatprep.subr.mxu0 0.0
    %1283 = vmatpush2.msra.mxu0 0.0
    %1284 = vmatprep.subr.mxu0 0.0
    %1285 = vmatpush2.msra.mxu0 0.0
    %1286 = vmatprep.subr.mxu0 0.0
    %1287 = vmatpush2.msra.mxu0 0.0
    %1288 = vmatprep.subr.mxu0 0.0
    %1289 = vmatpush2.msra.mxu0 0.0
    %1290 = vmatprep.subr.mxu0 0.0
    %1291 = vmatpush2.msra.mxu0 0.0
    %1292 = vmatprep.subr.mxu0 0.0
    %1293 = vmatpush2.msra.mxu0 0.0
    %1294 = vmatprep.subr.mxu0 0.0
    %1295 = vmatpush2.msra.mxu0 0.0
    %1296 = vmatprep.subr.mxu0 0.0
    %1297 = vmatpush2.msra.mxu0 0.0
    %1298 = vmatprep.subr.mxu0 0.0
    %1299 = vmatpush2.msra.mxu0 0.0
    %1300 = vmatprep.subr.mxu0 0.0
    %1301 = vmatpush2.msra.mxu0 0.0
    %1302 = vmatprep.subr.mxu0 0.0
    %1303 = vmatpush2.msra.mxu0 0.0
    %1304 = vmatprep.subr.mxu0 0.0
    %1305 = vmatpush2.msra.mxu0 0.0
    %1306 = vmatprep.subr.mxu0 0.0
    %1307 = vmatpush2.msra.mxu0 0.0
    %1308 = vmatprep.mubr.f32.mxu0 0.0
    %1309 = vmatmul.mubr.f32.gmra.mxu0 %v1240
    %v1310 = vpop.f32.mrf.mxu0
    %v1311 = vadd.f32 0.0, %v1310
    %v1312 = vpop.f32.mrf.mxu0
    %1313 = vmatprep.mubr.f32.mxu0 0.0
    %1314 = vmatmul.mubr.f32.gmra.mxu0 %v1241
    %v1315 = vpop.f32.mrf.mxu0
    %v1316 = vadd.f32 0.0, %v1315
    %v1317 = vpop.f32.mrf.mxu0
    %1318 = vmatprep.mubr.f32.mxu0 0.0
    %1319 = vmatmul.mubr.f32.gmra.mxu0 %v1242
    %v1320 = vpop.f32.mrf.mxu0
    %v1321 = vadd.f32 0.0, %v1320
    %v1322 = vpop.f32.mrf.mxu0
    %1323 = vmatprep.mubr.f32.mxu0 0.0
    %1324 = vmatmul.mubr.f32.gmra.mxu0 %v1243
    %v1325 = vpop.f32.mrf.mxu0
    %v1326 = vadd.f32 0.0, %v1325
    %v1327 = vpop.f32.mrf.mxu0
    %1328 = vdwg.mxu0
    %1329 = vst.msk [vmem:[#allocation2] sm:$0xff] %vm758, %v1311
    %1330 = vst.msk [vmem:[#allocation2 + $0x8] sm:$0xff] %vm758, %v1316
    %1331 = vst.msk [vmem:[#allocation2 + $0x10] sm:$0xff] %vm758, %v1321
    %1332 = vst.msk [vmem:[#allocation2 + $0x18] sm:$0xff] %vm758, %v1326
    %1333 = vmatprep.subr.mxu0 0.0
    %1334 = vmatpush1.msra.mxu0 %v1223
    %1335 = vmatprep.subr.mxu0 0.0
    %1336 = vmatpush1.msra.mxu0 %v1222
    %1337 = vmatprep.subr.mxu0 0.0
    %1338 = vmatpush1.msra.mxu0 %v1221
    %1339 = vmatprep.subr.mxu0 0.0
    %1340 = vmatpush1.msra.mxu0 %v1220
    %1341 = vmatprep.subr.mxu0 0.0
    %1342 = vmatpush1.msra.mxu0 %v1219
    %1343 = vmatprep.subr.mxu0 0.0
    %1344 = vmatpush1.msra.mxu0 %v1218
    %1345 = vmatprep.subr.mxu0 0.0
    %1346 = vmatpush1.msra.mxu0 %v1217
    %1347 = vmatprep.subr.mxu0 0.0
    %1348 = vmatpush1.msra.mxu0 %v1216
    %1349 = vmatprep.subr.mxu0 0.0
    %1350 = vmatpush1.msra.mxu0 %v1215
    %1351 = vmatprep.subr.mxu0 0.0
    %1352 = vmatpush1.msra.mxu0 %v1214
    %1353 = vmatprep.subr.mxu0 0.0
    %1354 = vmatpush1.msra.mxu0 %v1213
    %1355 = vmatprep.subr.mxu0 0.0
    %1356 = vmatpush1.msra.mxu0 %v1212
    %1357 = vmatprep.subr.mxu0 0.0
    %1358 = vmatpush1.msra.mxu0 %v1211
    %1359 = vmatprep.subr.mxu0 0.0
    %1360 = vmatpush1.msra.mxu0 %v1210
    %1361 = vmatprep.subr.mxu0 0.0
    %1362 = vmatpush1.msra.mxu0 %v1209
    %1363 = vmatprep.subr.mxu0 0.0
    %1364 = vmatpush1.msra.mxu0 %v1208
    %1365 = vmatprep.subr.mxu0 0.0
    %1366 = vmatpush2.msra.mxu0 0.0
    %1367 = vmatprep.subr.mxu0 0.0
    %1368 = vmatpush2.msra.mxu0 0.0
    %1369 = vmatprep.subr.mxu0 0.0
    %1370 = vmatpush2.msra.mxu0 0.0
    %1371 = vmatprep.subr.mxu0 0.0
    %1372 = vmatpush2.msra.mxu0 0.0
    %1373 = vmatprep.subr.mxu0 0.0
    %1374 = vmatpush2.msra.mxu0 0.0
    %1375 = vmatprep.subr.mxu0 0.0
    %1376 = vmatpush2.msra.mxu0 0.0
    %1377 = vmatprep.subr.mxu0 0.0
    %1378 = vmatpush2.msra.mxu0 0.0
    %1379 = vmatprep.subr.mxu0 0.0
    %1380 = vmatpush2.msra.mxu0 0.0
    %1381 = vmatprep.subr.mxu0 0.0
    %1382 = vmatpush2.msra.mxu0 0.0
    %1383 = vmatprep.subr.mxu0 0.0
    %1384 = vmatpush2.msra.mxu0 0.0
    %1385 = vmatprep.subr.mxu0 0.0
    %1386 = vmatpush2.msra.mxu0 0.0
    %1387 = vmatprep.subr.mxu0 0.0
    %1388 = vmatpush2.msra.mxu0 0.0
    %1389 = vmatprep.subr.mxu0 0.0
    %1390 = vmatpush2.msra.mxu0 0.0
    %1391 = vmatprep.subr.mxu0 0.0
    %1392 = vmatpush2.msra.mxu0 0.0
    %1393 = vmatprep.subr.mxu0 0.0
    %1394 = vmatpush2.msra.mxu0 0.0
    %1395 = vmatprep.subr.mxu0 0.0
    %1396 = vmatpush2.msra.mxu0 0.0
    %1397 = vmatprep.mubr.f32.mxu0 0.0
    %1398 = vmatmul.mubr.f32.gmra.mxu0 %v1240
    %v1399 = vpop.f32.mrf.mxu0
    %v1400 = vadd.f32 0.0, %v1399
    %v1401 = vpop.f32.mrf.mxu0
    %1402 = vmatprep.mubr.f32.mxu0 0.0
    %1403 = vmatmul.mubr.f32.gmra.mxu0 %v1241
    %v1404 = vpop.f32.mrf.mxu0
    %v1405 = vadd.f32 0.0, %v1404
    %v1406 = vpop.f32.mrf.mxu0
    %1407 = vmatprep.mubr.f32.mxu0 0.0
    %1408 = vmatmul.mubr.f32.gmra.mxu0 %v1242
    %v1409 = vpop.f32.mrf.mxu0
    %v1410 = vadd.f32 0.0, %v1409
    %v1411 = vpop.f32.mrf.mxu0
    %1412 = vmatprep.mubr.f32.mxu0 0.0
    %1413 = vmatmul.mubr.f32.gmra.mxu0 %v1243
    %v1414 = vpop.f32.mrf.mxu0
    %v1415 = vadd.f32 0.0, %v1414
    %v1416 = vpop.f32.mrf.mxu0
    %1417 = vdwg.mxu0
    %s1418 = scalar_lea.vmem [#allocation2], 32
    %1419 = vst.msk [vmem:[%s1418] sm:$0xff] %vm758, %v1400
    %1420 = vst.msk [vmem:[%s1418 + $0x8] sm:$0xff] %vm758, %v1405
    %1421 = vst.msk [vmem:[%s1418 + $0x10] sm:$0xff] %vm758, %v1410
    %1422 = vst.msk [vmem:[%s1418 + $0x18] sm:$0xff] %vm758, %v1415
    %1423 = vmatprep.subr.mxu0 0.0
    %1424 = vmatpush1.msra.mxu0 %v1239
    %1425 = vmatprep.subr.mxu0 0.0
    %1426 = vmatpush1.msra.mxu0 %v1238
    %1427 = vmatprep.subr.mxu0 0.0
    %1428 = vmatpush1.msra.mxu0 %v1237
    %1429 = vmatprep.subr.mxu0 0.0
    %1430 = vmatpush1.msra.mxu0 %v1236
    %1431 = vmatprep.subr.mxu0 0.0
    %1432 = vmatpush1.msra.mxu0 %v1235
    %1433 = vmatprep.subr.mxu0 0.0
    %1434 = vmatpush1.msra.mxu0 %v1234
    %1435 = vmatprep.subr.mxu0 0.0
    %1436 = vmatpush1.msra.mxu0 %v1233
    %1437 = vmatprep.subr.mxu0 0.0
    %1438 = vmatpush1.msra.mxu0 %v1232
    %1439 = vmatprep.subr.mxu0 0.0
    %1440 = vmatpush1.msra.mxu0 %v1231
    %1441 = vmatprep.subr.mxu0 0.0
    %1442 = vmatpush1.msra.mxu0 %v1230
    %1443 = vmatprep.subr.mxu0 0.0
    %1444 = vmatpush1.msra.mxu0 %v1229
    %1445 = vmatprep.subr.mxu0 0.0
    %1446 = vmatpush1.msra.mxu0 %v1228
    %1447 = vmatprep.subr.mxu0 0.0
    %1448 = vmatpush1.msra.mxu0 %v1227
    %1449 = vmatprep.subr.mxu0 0.0
    %1450 = vmatpush1.msra.mxu0 %v1226
    %1451 = vmatprep.subr.mxu0 0.0
    %1452 = vmatpush1.msra.mxu0 %v1225
    %1453 = vmatprep.subr.mxu0 0.0
    %1454 = vmatpush1.msra.mxu0 %v1224
    %1455 = vmatprep.subr.mxu0 0.0
    %1456 = vmatpush2.msra.mxu0 0.0
    %1457 = vmatprep.subr.mxu0 0.0
    %1458 = vmatpush2.msra.mxu0 0.0
    %1459 = vmatprep.subr.mxu0 0.0
    %1460 = vmatpush2.msra.mxu0 0.0
    %1461 = vmatprep.subr.mxu0 0.0
    %1462 = vmatpush2.msra.mxu0 0.0
    %1463 = vmatprep.subr.mxu0 0.0
    %1464 = vmatpush2.msra.mxu0 0.0
    %1465 = vmatprep.subr.mxu0 0.0
    %1466 = vmatpush2.msra.mxu0 0.0
    %1467 = vmatprep.subr.mxu0 0.0
    %1468 = vmatpush2.msra.mxu0 0.0
    %1469 = vmatprep.subr.mxu0 0.0
    %1470 = vmatpush2.msra.mxu0 0.0
    %1471 = vmatprep.subr.mxu0 0.0
    %1472 = vmatpush2.msra.mxu0 0.0
    %1473 = vmatprep.subr.mxu0 0.0
    %1474 = vmatpush2.msra.mxu0 0.0
    %1475 = vmatprep.subr.mxu0 0.0
    %1476 = vmatpush2.msra.mxu0 0.0
    %1477 = vmatprep.subr.mxu0 0.0
    %1478 = vmatpush2.msra.mxu0 0.0
    %1479 = vmatprep.subr.mxu0 0.0
    %1480 = vmatpush2.msra.mxu0 0.0
    %1481 = vmatprep.subr.mxu0 0.0
    %1482 = vmatpush2.msra.mxu0 0.0
    %1483 = vmatprep.subr.mxu0 0.0
    %1484 = vmatpush2.msra.mxu0 0.0
    %1485 = vmatprep.subr.mxu0 0.0
    %1486 = vmatpush2.msra.mxu0 0.0
    %1487 = vmatprep.mubr.f32.mxu0 0.0
    %1488 = vmatmul.mubr.f32.gmra.mxu0 %v1240
    %v1489 = vpop.f32.mrf.mxu0
    %v1490 = vadd.f32 0.0, %v1489
    %v1491 = vpop.f32.mrf.mxu0
    %1492 = vmatprep.mubr.f32.mxu0 0.0
    %1493 = vmatmul.mubr.f32.gmra.mxu0 %v1241
    %v1494 = vpop.f32.mrf.mxu0
    %v1495 = vadd.f32 0.0, %v1494
    %v1496 = vpop.f32.mrf.mxu0
    %1497 = vmatprep.mubr.f32.mxu0 0.0
    %1498 = vmatmul.mubr.f32.gmra.mxu0 %v1242
    %v1499 = vpop.f32.mrf.mxu0
    %v1500 = vadd.f32 0.0, %v1499
    %v1501 = vpop.f32.mrf.mxu0
    %1502 = vmatprep.mubr.f32.mxu0 0.0
    %1503 = vmatmul.mubr.f32.gmra.mxu0 %v1243
    %v1504 = vpop.f32.mrf.mxu0
    %v1505 = vadd.f32 0.0, %v1504
    %v1506 = vpop.f32.mrf.mxu0
    %1507 = vdwg.mxu0
    %s1508 = scalar_lea.vmem [#allocation2], 64
    %1509 = vst.msk [vmem:[%s1508] sm:$0xff] %vm758, %v1490
    %1510 = vst.msk [vmem:[%s1508 + $0x8] sm:$0xff] %vm758, %v1495
    %1511 = vst.msk [vmem:[%s1508 + $0x10] sm:$0xff] %vm758, %v1500
    %1512 = vst.msk [vmem:[%s1508 + $0x18] sm:$0xff] %vm758, %v1505
    // Predicated region
    $region14: #{tpu_custom_call.1} parent=1 // pred_check
      _
    $region15: #{tpu_custom_call.1} parent=1 // pred_check_branch
      %1514 = sbr.rel (0) target = $region17
    $region16: #{tpu_custom_call.1} parent=1 // pred_region
      %s1516 = ssub.s32 1536, 1536
      %1517 = vsyncadd [#allocation3], %s1516
      %s1518 = sshll.u32 [#allocation2], 4
      %s1519 = int_to_ptr.vmem [resolvable:$true] %s1518
      %1524 = dma.vmem_to_hbm [thread:$0]  %s1519, 1536, %s3, [#allocation3], 128, 128, 8
    $region17: #{tpu_custom_call.1} parent=1 // pred_fallthru
      _
    // Predicated region
    $region18: #{tpu_custom_call.1} parent=1 // pred_check
      _
    $region19: #{tpu_custom_call.1} parent=1 // pred_check_branch
      %1526 = sbr.rel (0) target = $region21
    $region20: #{tpu_custom_call.1} parent=1 // pred_region
      %1527 = dma.done [#allocation3], 1536
    $region21: #{tpu_custom_call.1} parent=1 // pred_fallthru
      _
    %1528 = vsyncpa [#allocation3], 1

</llo_original>
